<compile_context>
chip_gen: v7x
topology: tpu7x:2x2x1
jax: 0.10.0
libtpu: 0.0.40
codegen_flags: <defaults>
</compile_context>

<pallas_src>
import functools

import jax
import jax.numpy as jnp
from jax.experimental import pallas as pl
from jax.experimental.pallas import tpu as pltpu

EPS = 1e-5
NEG_SLOPE = 0.2


def _phase_taps_1d(K, phase):
    """For output parity `phase`, list of (kernel tap k, input offset d)."""
    p = K // 2
    taps = []
    for k in range(K):
        if (phase + k - p) % 2 == 0:
            taps.append((k, (phase + k - p) // 2))
    return taps


def _pick_tile_rows(H, W, N, tile_rows):
    """Choose a row-tile height TH that divides H; prefer an even total grid."""
    if tile_rows is None:
        tile_rows = min(H, max(1, 2048 // max(W, 1)))
    th = max(1, min(int(tile_rows), H))
    while H % th:
        th -= 1
    # v7x has 2 TensorCores/chip: avoid an odd/tiny grid if a divisor allows it.
    if (N * (H // th)) % 2 != 0:
        for cand in range(th, 0, -1):
            if H % cand == 0 and (N * (H // cand)) % 2 == 0:
                th = cand
                break
    # z block second-to-last dim must be 8-divisible (or the full dim).
    if (H // th) > 1 and (th * W) % 8 != 0:
        th = H
    return th


@functools.partial(jax.jit, static_argnames=("kernel", "tile_rows", "compute_dtype"))
def paper_decoder_block(input1, input2, weight_t, bias, gamma, beta, *,
                        kernel, tile_rows=None, compute_dtype="bfloat16"):
    """input1/input2: (N, in_dim, H, W) NCHW f32. Returns (N, out_dim, 2H, 2W)."""
    # Conv bias is exactly cancelled by *training-mode* BatchNorm (batch mean).
    # TODO(synk): do NOT reuse this path for eval-mode BN with running stats.
    del bias
    K = kernel
    if K % 2 != 1:
        # TODO(synk): even kernel sizes (ragged parity phases) not supported.
        raise NotImplementedError("paper_decoder_block: only odd kernel sizes supported")

    cdt = jnp.bfloat16 if compute_dtype == "bfloat16" else jnp.float32
    xbytes = 2 if cdt == jnp.bfloat16 else 4
    z_dtype = cdt
    zbytes = xbytes

    N, c1, H, W = input1.shape
    Cin = c1 + input2.shape[1]
    Cout = weight_t.shape[1]
    Ho, Wo = 2 * H, 2 * W
    C4 = 4 * Cout                                   # 4 output parities, channel-minor

    # -- static phase/tap analysis ------------------------------------------
    taps = {0: _phase_taps_1d(K, 0), 1: _phase_taps_1d(K, 1)}
    all_d = [d for ph in (0, 1) for (_, d) in taps[ph]]
    d_min, d_max = min(all_d), max(all_d)
    R = d_max - d_min + 1                           # compact neighbourhood extent
    KC = R * R * Cin

    # -- weight: (Cin, Cout, K, K) -> (KC, C4), phase-major output columns ----
    w_full = jnp.zeros((KC, C4), jnp.float32)
    for ph in (0, 1):
        for pw in (0, 1):
            pi = ph * 2 + pw
            for (kh, dh) in taps[ph]:
                for (kw, dw) in taps[pw]:
                    blk = weight_t[:, :, K - 1 - kh, K - 1 - kw].astype(jnp.float32)
                    r0 = ((dh - d_min) * R + (dw - d_min)) * Cin
                    w_full = w_full.at[r0:r0 + Cin, pi * Cout:(pi + 1) * Cout].set(blk)
    w_c = w_full.astype(cdt)

    # -- un-inflated padded NHWC input (no host-side im2col) ------------------
    x_nhwc = jnp.concatenate([jnp.transpose(input1, (0, 2, 3, 1)),
                              jnp.transpose(input2, (0, 2, 3, 1))], axis=-1).astype(cdt)
    xp = jnp.pad(x_nhwc, ((0, 0), (-d_min, d_max), (-d_min, d_max), (0, 0)))
    Hp, Wp = H + R - 1, W + R - 1

    # -- tiling ----------------------------------------------------------------
    TH = _pick_tile_rows(H, W, N, tile_rows)
    GH = H // TH
    TM = TH * W
    HW = H * W
    Gt = N * GH

    # -- VMEM budget: count double buffers, clamp to physical - 16 MiB headroom -
    try:
        phys = int(pltpu.get_tpu_info().vmem_capacity_bytes)
    except Exception:
        phys = 64 << 20                             # conservative (v7x per-TC)
    cap = max(phys - (16 << 20), 16 << 20)
    need1 = (2 * Hp * Wp * Cin * xbytes             # resident image (double-buffered)
             + 2 * KC * C4 * xbytes                 # resident weight (double-buffered)
             + 2 * TM * C4 * zbytes                 # z out tiles
             + 2 * 2 * C4 * 4                       # stats tiles
             + 4 * TM * C4 * 4                      # f32 accumulator + temporaries
             + (4 << 20))
    need2 = (2 * TM * C4 * zbytes + 2 * TM * C4 * 4 + 4 * C4 * 4 + (4 << 20))
    cp1 = pltpu.CompilerParams(dimension_semantics=("parallel", "parallel"),
                               vmem_limit_bytes=int(min(max(need1, 8 << 20), cap)))
    cp2 = pltpu.CompilerParams(dimension_semantics=("parallel", "parallel"),
                               vmem_limit_bytes=int(min(max(need2, 8 << 20), cap)))

    # ------------------------------------------------------------------------
    # Pass 1: in-kernel im2col (per-tap dots) + bf16 z + per-tile BN partials
    # ------------------------------------------------------------------------
    def conv_stats_kernel(x_ref, w_ref, z_ref, stats_ref):
        h = pl.program_id(1)
        row0 = h * TH
        # one dynamic-offset slab load; image block is resident across h
        xt = x_ref[0, pl.ds(row0, TH + R - 1), :, :]        # (TH+R-1, Wp, Cin)
        acc = jnp.zeros((TM, C4), jnp.float32)
        for i in range(R):
            for j in range(R):
                xi = xt[i:i + TH, j:j + W, :].reshape(TM, Cin)
                wi = w_ref[(i * R + j) * Cin:(i * R + j + 1) * Cin, :]
                acc = acc + jnp.dot(xi, wi, preferred_element_type=jnp.float32)
        z_ref[0] = acc.astype(z_ref.dtype)
        # two direct stores (no concat relayout)
        stats_ref[0, 0:1, :] = jnp.sum(acc, axis=0, keepdims=True)
        stats_ref[0, 1:2, :] = jnp.sum(acc * acc, axis=0, keepdims=True)

    z, stats = pl.pallas_call(
        conv_stats_kernel,
        out_shape=(jax.ShapeDtypeStruct((N, HW, C4), z_dtype),
                   jax.ShapeDtypeStruct((Gt, 2, C4), jnp.float32)),
        grid=(N, GH),
        in_specs=[pl.BlockSpec((1, Hp, Wp, Cin), lambda n, h: (n, 0, 0, 0)),
                  pl.BlockSpec((KC, C4), lambda n, h: (0, 0))],
        out_specs=(pl.BlockSpec((1, TM, C4), lambda n, h: (n, h, 0)),
                   pl.BlockSpec((1, 2, C4), lambda n, h: (n * GH + h, 0, 0))),
        compiler_params=cp1,
        cost_estimate=pl.CostEstimate(
            flops=2 * N * HW * KC * C4,
            transcendentals=0,
            bytes_accessed=(N * Hp * Wp * Cin * xbytes + KC * C4 * xbytes
                            + N * HW * C4 * zbytes + Gt * 2 * C4 * 4)),
    )(xp, w_c)

    # -- exact batch statistics (numerically-stable parallel-variance merge) ---
    cnt = jnp.float32(TM)                           # elements per (tile, phase, channel)
    s_t = stats[:, 0, :].reshape(Gt, 4, Cout)
    q_t = stats[:, 1, :].reshape(Gt, 4, Cout)
    mean_t = s_t / cnt
    m2_t = jnp.maximum(q_t - s_t * mean_t, 0.0)
    total = jnp.float32(N * Ho * Wo)                # true per-channel element count
    mean_c = jnp.sum(s_t, axis=(0, 1)) / total
    m2_c = (jnp.sum(m2_t, axis=(0, 1))
            + cnt * jnp.sum((mean_t - mean_c[None, None, :]) ** 2, axis=(0, 1)))
    var_c = m2_c / total                            # biased variance (matches BN train)
    inv_std_c = jax.lax.rsqrt(var_c + EPS)
    scale_c = gamma.astype(jnp.float32) * inv_std_c
    shift_c = beta.astype(jnp.float32) - mean_c * scale_c
    scale_v = jnp.tile(scale_c, 4).reshape(1, C4)
    shift_v = jnp.tile(shift_c, 4).reshape(1, C4)

    # ------------------------------------------------------------------------
    # Pass 2: y = LeakyReLU(z * scale + shift)
    # ------------------------------------------------------------------------
    def bn_act_kernel(z_ref, scale_ref, shift_ref, y_ref):
        y = z_ref[0].astype(jnp.float32) * scale_ref[...] + shift_ref[...]
        y_ref[0] = jnp.maximum(y, NEG_SLOPE * y)

    y = pl.pallas_call(
        bn_act_kernel,
        out_shape=jax.ShapeDtypeStruct((N, HW, C4), jnp.float32),
        grid=(N, GH),
        in_specs=[pl.BlockSpec((1, TM, C4), lambda n, h: (n, h, 0)),
                  pl.BlockSpec((1, C4), lambda n, h: (0, 0)),
                  pl.BlockSpec((1, C4), lambda n, h: (0, 0))],
        out_specs=pl.BlockSpec((1, TM, C4), lambda n, h: (n, h, 0)),
        compiler_params=cp2,
        cost_estimate=pl.CostEstimate(
            flops=4 * N * HW * C4,
            transcendentals=0,
            bytes_accessed=N * HW * C4 * (zbytes + 4) + 2 * C4 * 4),
    )(z, scale_v, shift_v)

    # -- pixel-shuffle the 4 parity phases back to NCHW (exact-sized transpose) -
    y = y.reshape(N, H, W, 2, 2, Cout)              # (N, H, W, ph, pw, C)
    y = jnp.transpose(y, (0, 5, 1, 3, 2, 4))        # (N, C, H, ph, W, pw)
    return y.reshape(N, Cout, Ho, Wo)


# ---------------------------------------------------------------------------
# Pure-JAX reference (includes the conv bias, validating that it is a no-op)
# ---------------------------------------------------------------------------
def _reference(input1, input2, weight_t, bias, gamma, beta, *, kernel):
    stride, padding, output_padding = 2, kernel // 2, 1
    K = kernel
    x = jnp.concatenate([input1, input2], axis=1)            # NCHW
    w_conv = jnp.transpose(jnp.flip(weight_t, axis=(2, 3)), (1, 0, 2, 3))  # OIHW
    pad_lo = K - 1 - padding
    pad_hi = K - 1 - padding + output_padding
    y = jax.lax.conv_general_dilated(
        x, w_conv, window_strides=(1, 1),
        padding=[(pad_lo, pad_hi), (pad_lo, pad_hi)],
        lhs_dilation=(stride, stride),
        dimension_numbers=("NCHW", "OIHW", "NCHW"),
        precision=jax.lax.Precision.HIGHEST)
    y = y + bias[None, :, None, None]
    mean = y.mean(axis=(0, 2, 3), keepdims=True)
    var = ((y - mean) ** 2).mean(axis=(0, 2, 3), keepdims=True)
    yn = (y - mean) * jax.lax.rsqrt(var + EPS)
    yn = yn * gamma[None, :, None, None] + beta[None, :, None, None]
    return jnp.where(yn >= 0.0, yn, NEG_SLOPE * yn)


if __name__ == "__main__":
    # batch=2, in_dim=4 (concat -> 8 channels), out_dim=4, kernel=3, spatial 16x16
    # -> output (2, 4, 32, 32).  tile_rows=8 gives a (2, 2) grid so the tiled
    # two-pass BatchNorm path is actually exercised (and the grid is even).
    N, in_dim, out_dim, K, H, W = 2, 4, 4, 3, 16, 16

    key = jax.random.PRNGKey(0)
    k1, k2, k3, k4, k5, k6 = jax.random.split(key, 6)

    input1 = jax.random.normal(k1, (N, in_dim, H, W), jnp.float32)
    input2 = jax.random.normal(k2, (N, in_dim, H, W), jnp.float32)

    # ConvTranspose2d weight shape: (in_channels=2*in_dim, out_channels, K, K)
    weight_t = 0.1 * jax.random.normal(k3, (2 * in_dim, out_dim, K, K), jnp.float32)
    bias = 0.1 * jax.random.normal(k4, (out_dim,), jnp.float32)
    gamma = 1.0 + 0.1 * jax.random.normal(k5, (out_dim,), jnp.float32)
    beta = 0.1 * jax.random.normal(k6, (out_dim,), jnp.float32)

    out = paper_decoder_block(input1, input2, weight_t, bias, gamma, beta,
                              kernel=K, tile_rows=8)
    out = jax.block_until_ready(out)

    ref = _reference(input1, input2, weight_t, bias, gamma, beta, kernel=K)
    assert out.shape == (N, out_dim, 2 * H, 2 * W), out.shape
    max_err = float(jnp.abs(out - ref).max())
    assert jnp.allclose(out, ref, rtol=5e-2, atol=5e-2), max_err

    print("KERNEL_OK")
</pallas_src>

<mosaic_0001>
module attributes {stable_mosaic.version = 11 : i64} {
  func.func @conv_stats_kernel(%arg0: i32, %arg1: i32, %arg2: memref<1x17x17x8xbf16, #tpu.memory_space<vmem>>, %arg3: memref<32x16xbf16, #tpu.memory_space<vmem>>, %arg4: memref<1x128x16xbf16, #tpu.memory_space<vmem>>, %arg5: memref<1x2x16xf32, #tpu.memory_space<vmem>>) attributes {dimension_semantics = [#tpu.dimension_semantics<parallel>, #tpu.dimension_semantics<parallel>], iteration_bounds = array<i64: 2, 2>, scalar_prefetch = 0 : i64, scratch_operands = 0 : i64, tpu.core_type = #tpu.core_type<tc>, window_params = [{transform_indices = @transform_0, window_bounds = array<i64: 1, 17, 17, 8>}, {pipeline_mode = #tpu.pipeline_mode<synchronous>, transform_indices = @transform_1, window_bounds = array<i64: 32, 16>}, {transform_indices = @transform_2, window_bounds = array<i64: 1, 128, 16>}, {transform_indices = @transform_3, window_bounds = array<i64: 1, 2, 16>}]} {
    %c8_i32 = arith.constant 8 : i32
    %0 = arith.muli %arg1, %c8_i32 : i32
    %c0 = arith.constant 0 : index
    %1 = arith.index_cast %0 : i32 to index
    %c0_0 = arith.constant 0 : index
    %c0_1 = arith.constant 0 : index
    %2 = vector.load %arg2[%c0, %1, %c0_0, %c0_1] : memref<1x17x17x8xbf16, #tpu.memory_space<vmem>>, vector<1x9x17x8xbf16>
    %3 = vector.shape_cast %2 : vector<1x9x17x8xbf16> to vector<9x17x8xbf16>
    %cst = arith.constant 0.000000e+00 : f32
    %4 = vector.broadcast %cst : f32 to vector<128x16xf32>
    %5 = vector.extract_strided_slice %3 {offsets = [0, 0, 0], sizes = [8, 16, 8], strides = [1, 1, 1]} : vector<9x17x8xbf16> to vector<8x16x8xbf16>
    %6 = vector.shape_cast %5 : vector<8x16x8xbf16> to vector<128x8xbf16>
    %c0_2 = arith.constant 0 : index
    %c0_3 = arith.constant 0 : index
    %7 = vector.load %arg3[%c0_2, %c0_3] : memref<32x16xbf16, #tpu.memory_space<vmem>>, vector<8x16xbf16>
    %cst_4 = arith.constant dense<0.000000e+00> : vector<128x16xf32>
    %8 = tpu.matmul %6, %7, %cst_4 {dimension_numbers = #tpu.dot_dimension_numbers<[1], [0], [0], [1], [0, 0, 1, 1], [], []>} : vector<128x8xbf16>, vector<8x16xbf16>, vector<128x16xf32> -> vector<128x16xf32>
    %9 = arith.addf %4, %8 : vector<128x16xf32>
    %10 = vector.extract_strided_slice %3 {offsets = [0, 1, 0], sizes = [8, 16, 8], strides = [1, 1, 1]} : vector<9x17x8xbf16> to vector<8x16x8xbf16>
    %11 = vector.shape_cast %10 : vector<8x16x8xbf16> to vector<128x8xbf16>
    %c8 = arith.constant 8 : index
    %c0_5 = arith.constant 0 : index
    %12 = vector.load %arg3[%c8, %c0_5] : memref<32x16xbf16, #tpu.memory_space<vmem>>, vector<8x16xbf16>
    %cst_6 = arith.constant dense<0.000000e+00> : vector<128x16xf32>
    %13 = tpu.matmul %11, %12, %cst_6 {dimension_numbers = #tpu.dot_dimension_numbers<[1], [0], [0], [1], [0, 0, 1, 1], [], []>} : vector<128x8xbf16>, vector<8x16xbf16>, vector<128x16xf32> -> vector<128x16xf32>
    %14 = arith.addf %9, %13 : vector<128x16xf32>
    %15 = vector.extract_strided_slice %3 {offsets = [1, 0, 0], sizes = [8, 16, 8], strides = [1, 1, 1]} : vector<9x17x8xbf16> to vector<8x16x8xbf16>
    %16 = vector.shape_cast %15 : vector<8x16x8xbf16> to vector<128x8xbf16>
    %c16 = arith.constant 16 : index
    %c0_7 = arith.constant 0 : index
    %17 = vector.load %arg3[%c16, %c0_7] : memref<32x16xbf16, #tpu.memory_space<vmem>>, vector<8x16xbf16>
    %cst_8 = arith.constant dense<0.000000e+00> : vector<128x16xf32>
    %18 = tpu.matmul %16, %17, %cst_8 {dimension_numbers = #tpu.dot_dimension_numbers<[1], [0], [0], [1], [0, 0, 1, 1], [], []>} : vector<128x8xbf16>, vector<8x16xbf16>, vector<128x16xf32> -> vector<128x16xf32>
    %19 = arith.addf %14, %18 : vector<128x16xf32>
    %20 = vector.extract_strided_slice %3 {offsets = [1, 1, 0], sizes = [8, 16, 8], strides = [1, 1, 1]} : vector<9x17x8xbf16> to vector<8x16x8xbf16>
    %21 = vector.shape_cast %20 : vector<8x16x8xbf16> to vector<128x8xbf16>
    %c24 = arith.constant 24 : index
    %c0_9 = arith.constant 0 : index
    %22 = vector.load %arg3[%c24, %c0_9] : memref<32x16xbf16, #tpu.memory_space<vmem>>, vector<8x16xbf16>
    %cst_10 = arith.constant dense<0.000000e+00> : vector<128x16xf32>
    %23 = tpu.matmul %21, %22, %cst_10 {dimension_numbers = #tpu.dot_dimension_numbers<[1], [0], [0], [1], [0, 0, 1, 1], [], []>} : vector<128x8xbf16>, vector<8x16xbf16>, vector<128x16xf32> -> vector<128x16xf32>
    %24 = arith.addf %19, %23 : vector<128x16xf32>
    %25 = arith.truncf %24 : vector<128x16xf32> to vector<128x16xbf16>
    %c0_11 = arith.constant 0 : index
    %c0_12 = arith.constant 0 : index
    %c0_13 = arith.constant 0 : index
    %26 = vector.load %arg4[%c0_11, %c0_12, %c0_13] : memref<1x128x16xbf16, #tpu.memory_space<vmem>>, vector<1x128x16xbf16>
    %27 = vector.shape_cast %26 : vector<1x128x16xbf16> to vector<128x16xbf16>
    %28 = vector.shape_cast %25 : vector<128x16xbf16> to vector<1x128x16xbf16>
    tpu.vector_store %arg4[%c0_11, %c0_12, %c0_13], %28 {strides = array<i32>} : memref<1x128x16xbf16, #tpu.memory_space<vmem>>, vector<1x128x16xbf16>,
    %cst_14 = arith.constant dense<0.000000e+00> : vector<16xf32>
    %29 = vector.multi_reduction <add>, %24, %cst_14 [0] : vector<128x16xf32> to vector<16xf32>
    %30 = vector.shape_cast %29 : vector<16xf32> to vector<1x16xf32>
    %c0_15 = arith.constant 0 : index
    %c0_16 = arith.constant 0 : index
    %c0_17 = arith.constant 0 : index
    %31 = vector.load %arg5[%c0_15, %c0_16, %c0_17] : memref<1x2x16xf32, #tpu.memory_space<vmem>>, vector<1x1x16xf32>
    %32 = vector.shape_cast %31 : vector<1x1x16xf32> to vector<1x16xf32>
    %33 = vector.shape_cast %30 : vector<1x16xf32> to vector<1x1x16xf32>
    tpu.vector_store %arg5[%c0_15, %c0_16, %c0_17], %33 {strides = array<i32>} : memref<1x2x16xf32, #tpu.memory_space<vmem>>, vector<1x1x16xf32>,
    %34 = arith.mulf %24, %24 : vector<128x16xf32>
    %cst_18 = arith.constant dense<0.000000e+00> : vector<16xf32>
    %35 = vector.multi_reduction <add>, %34, %cst_18 [0] : vector<128x16xf32> to vector<16xf32>
    %36 = vector.shape_cast %35 : vector<16xf32> to vector<1x16xf32>
    %c0_19 = arith.constant 0 : index
    %c1 = arith.constant 1 : index
    %c0_20 = arith.constant 0 : index
    %37 = vector.load %arg5[%c0_19, %c1, %c0_20] : memref<1x2x16xf32, #tpu.memory_space<vmem>>, vector<1x1x16xf32>
    %38 = vector.shape_cast %37 : vector<1x1x16xf32> to vector<1x16xf32>
    %39 = vector.shape_cast %36 : vector<1x16xf32> to vector<1x1x16xf32>
    tpu.vector_store %arg5[%c0_19, %c1, %c0_20], %39 {strides = array<i32>} : memref<1x2x16xf32, #tpu.memory_space<vmem>>, vector<1x1x16xf32>,
    return
  }
  func.func @transform_0(%arg0: i32, %arg1: i32) -> (i32, i32, i32, i32) {
    %c0_i32 = arith.constant 0 : i32
    %c0_i32_0 = arith.constant 0 : i32
    %c0_i32_1 = arith.constant 0 : i32
    %c0_i32_2 = arith.constant 0 : i32
    return %arg0, %c0_i32, %c0_i32_0, %c0_i32_1 : i32, i32, i32, i32
  }
  func.func @transform_1(%arg0: i32, %arg1: i32) -> (i32, i32) {
    %c0_i32 = arith.constant 0 : i32
    %c0_i32_0 = arith.constant 0 : i32
    %c0_i32_1 = arith.constant 0 : i32
    return %c0_i32, %c0_i32_0 : i32, i32
  }
  func.func @transform_2(%arg0: i32, %arg1: i32) -> (i32, i32, i32) {
    %c0_i32 = arith.constant 0 : i32
    %c0_i32_0 = arith.constant 0 : i32
    return %arg0, %arg1, %c0_i32 : i32, i32, i32
  }
  func.func @transform_3(%arg0: i32, %arg1: i32) -> (i32, i32, i32) {
    %c2_i32 = arith.constant 2 : i32
    %0 = arith.muli %arg0, %c2_i32 : i32
    %1 = arith.addi %0, %arg1 : i32
    %c0_i32 = arith.constant 0 : i32
    %c0_i32_0 = arith.constant 0 : i32
    %c0_i32_1 = arith.constant 0 : i32
    return %1, %c0_i32, %c0_i32_0 : i32, i32, i32
  }
}

module attributes {stable_mosaic.version = 11 : i64} {
  func.func @bn_act_kernel(%arg0: i32, %arg1: i32, %arg2: memref<1x128x16xbf16, #tpu.memory_space<vmem>>, %arg3: memref<1x16xf32, #tpu.memory_space<vmem>>, %arg4: memref<1x16xf32, #tpu.memory_space<vmem>>, %arg5: memref<1x128x16xf32, #tpu.memory_space<vmem>>) attributes {dimension_semantics = [#tpu.dimension_semantics<parallel>, #tpu.dimension_semantics<parallel>], iteration_bounds = array<i64: 2, 2>, scalar_prefetch = 0 : i64, scratch_operands = 0 : i64, tpu.core_type = #tpu.core_type<tc>, window_params = [{transform_indices = @transform_0, window_bounds = array<i64: 1, 128, 16>}, {pipeline_mode = #tpu.pipeline_mode<synchronous>, transform_indices = @transform_1, window_bounds = array<i64: 1, 16>}, {pipeline_mode = #tpu.pipeline_mode<synchronous>, transform_indices = @transform_2, window_bounds = array<i64: 1, 16>}, {transform_indices = @transform_3, window_bounds = array<i64: 1, 128, 16>}]} {
    %c0 = arith.constant 0 : index
    %c0_0 = arith.constant 0 : index
    %c0_1 = arith.constant 0 : index
    %0 = vector.load %arg2[%c0, %c0_0, %c0_1] : memref<1x128x16xbf16, #tpu.memory_space<vmem>>, vector<1x128x16xbf16>
    %1 = vector.shape_cast %0 : vector<1x128x16xbf16> to vector<128x16xbf16>
    %2 = arith.extf %1 : vector<128x16xbf16> to vector<128x16xf32>
    %c0_2 = arith.constant 0 : index
    %c0_3 = arith.constant 0 : index
    %3 = vector.load %arg3[%c0_2, %c0_3] : memref<1x16xf32, #tpu.memory_space<vmem>>, vector<1x16xf32>
    %4 = vector.broadcast %3 : vector<1x16xf32> to vector<128x16xf32>
    %5 = arith.mulf %2, %4 : vector<128x16xf32>
    %c0_4 = arith.constant 0 : index
    %c0_5 = arith.constant 0 : index
    %6 = vector.load %arg4[%c0_4, %c0_5] : memref<1x16xf32, #tpu.memory_space<vmem>>, vector<1x16xf32>
    %7 = vector.broadcast %6 : vector<1x16xf32> to vector<128x16xf32>
    %8 = arith.addf %5, %7 : vector<128x16xf32>
    %cst = arith.constant 2.000000e-01 : f32
    %9 = vector.broadcast %cst : f32 to vector<128x16xf32>
    %10 = arith.mulf %9, %8 : vector<128x16xf32>
    %11 = arith.maximumf %8, %10 : vector<128x16xf32>
    %c0_6 = arith.constant 0 : index
    %c0_7 = arith.constant 0 : index
    %c0_8 = arith.constant 0 : index
    %12 = vector.load %arg5[%c0_6, %c0_7, %c0_8] : memref<1x128x16xf32, #tpu.memory_space<vmem>>, vector<1x128x16xf32>
    %13 = vector.shape_cast %12 : vector<1x128x16xf32> to vector<128x16xf32>
    %14 = vector.shape_cast %11 : vector<128x16xf32> to vector<1x128x16xf32>
    tpu.vector_store %arg5[%c0_6, %c0_7, %c0_8], %14 {strides = array<i32>} : memref<1x128x16xf32, #tpu.memory_space<vmem>>, vector<1x128x16xf32>,
    return
  }
  func.func @transform_0(%arg0: i32, %arg1: i32) -> (i32, i32, i32) {
    %c0_i32 = arith.constant 0 : i32
    %c0_i32_0 = arith.constant 0 : i32
    return %arg0, %arg1, %c0_i32 : i32, i32, i32
  }
  func.func @transform_1(%arg0: i32, %arg1: i32) -> (i32, i32) {
    %c0_i32 = arith.constant 0 : i32
    %c0_i32_0 = arith.constant 0 : i32
    %c0_i32_1 = arith.constant 0 : i32
    return %c0_i32, %c0_i32_0 : i32, i32
  }
  func.func @transform_2(%arg0: i32, %arg1: i32) -> (i32, i32) {
    %c0_i32 = arith.constant 0 : i32
    %c0_i32_0 = arith.constant 0 : i32
    %c0_i32_1 = arith.constant 0 : i32
    return %c0_i32, %c0_i32_0 : i32, i32
  }
  func.func @transform_3(%arg0: i32, %arg1: i32) -> (i32, i32, i32) {
    %c0_i32 = arith.constant 0 : i32
    %c0_i32_0 = arith.constant 0 : i32
    return %arg0, %arg1, %c0_i32 : i32, i32, i32
  }
}

</mosaic_0001>

<llo_original>
// kernel: tile.19
$region0: #{tile.19}
  %s0 = inlined_call_operand.vmem [shape: f32[4,4], index: 0, kind: input, shape index: {}]
  %s1 = inlined_call_operand.vmem [shape: f32[1,16], index: 1, kind: output, shape index: {}]
  $region1: #{tile.19} parent=0
    #allocation0 [shape = 'u8[4096]{0}', space=vmem, size = 0x1000, scoped, tag = 'scoped mem for output reshape']
    #allocation1 [shape = 'u8[4096]{0}', space=vmem, size = 0x1000, scoped, tag = 'scoped mem for input reshape']
    %s3 = sshllo.u32 0, 4
    %v4 = vld [vmem:[%s0] sm:%s3]
    %5 = vst [vmem:[#allocation1] sm:%s3] %v4
    %v6 = vld [vmem:[#allocation1] sm:$0x1]
    %vm7 = vcmask 31744
    %8 = vst.msk [vmem:[#allocation0] sm:$0x1] %vm7, %v6
    %s9 = scalar_lea.vmem [#allocation1], 3
    %v10 = vld [vmem:[%s9] sm:$0x1]
    %11 = vrot.lane.b32.xlu0 %v10, 12
    %v12 = vpop.permute.xlu0 %11
    %vm13 = vcmask 130144
    %14 = vst.msk [vmem:[#allocation0] sm:$0x1] %vm13, %v12
    %s15 = scalar_lea.vmem [#allocation1], 2
    %v16 = vld [vmem:[%s15] sm:$0x1]
    %17 = vrot.lane.b32.xlu0 %v16, 8
    %v18 = vpop.permute.xlu0 %17
    %vm19 = vcmask 97344
    %20 = vst.msk [vmem:[#allocation0] sm:$0x1] %vm19, %v18
    %s21 = scalar_lea.vmem [#allocation1], 1
    %v22 = vld [vmem:[%s21] sm:$0x1]
    %23 = vrot.lane.b32.xlu0 %v22, 4
    %v24 = vpop.permute.xlu0 %23
    %vm25 = vcmask 64544
    %26 = vst.msk [vmem:[#allocation0] sm:$0x1] %vm25, %v24
    %s28 = sshllo.u32 0, 1
    %v30 = vld [vmem:[#allocation0] sm:%s28]
    %s31 = sshllo.u32 0, 1
    %32 = vst [vmem:[%s1] sm:%s31] %v30

// kernel: paper_decoder_block.3
$region0: #{paper_decoder_block.3}
  #allocation0 [shape = 'u32[]', space=smem, size = 0x4, offset = 0x4, fixed_abs, tag = 'smem constant byte address 0x4 - core index']
  #allocation1 [shape = 'u32[144,128]{1,0:T(1,128)}', space=vmem, size = 0x12000, scoped, tag = 'internal scratch']
  %s0 = inlined_call_operand.vmem [shape: bf16[2,256,16], index: 0, kind: input, shape index: {}]
  %s1 = inlined_call_operand.vmem [shape: f32[1,16], index: 1, kind: input, shape index: {}]
  %s2 = inlined_call_operand.vmem [shape: f32[1,16], index: 2, kind: input, shape index: {}]
  %s3 = inlined_call_operand.vmem [shape: f32[2,256,16], index: 3, kind: output, shape index: {}]
  %s4 = sld [smem:[#allocation0]]
  $region45: #{paper_decoder_block.3} parent=0
    _
  %s6 = ssub.s32 1, %s4
  %s7 = scalar_select 0, %s6, %s4
  loop: start=0, step=1, limit=6
  $region2: #{paper_decoder_block.3} parent=0 // loop_pre_header
    _
  $region3: #{paper_decoder_block.3} parent=0 // loop_header
    %s9 = sphi 0, %s13
    %p10 = scmp.ge.s32.totalorder %s9, 6
    %s16 = sphi 0, %s28
    %s17 = sphi 0, %s24
    %s18 = sphi 0, %s16
    %s19 = sphi 0, %s17
    %s20 = sphi 0, %s18
    %s21 = sphi 0, %s19
    %s33 = sphi 0, %s35
    %s36 = sphi 0, %s33
    %s37 = sphi 0, %s36
    %s53 = sphi 0, %s37
    %s57 = sphi 0, %s57
    %s59 = sphi 0, %s57
    %s60 = sphi 0, %s59
    %s74 = sphi 0, %s60
    %s78 = sphi 0, %s78
    %s80 = sphi 0, %s78
    %s81 = sphi 0, %s80
    %s95 = sphi 0, %s81
    %s103 = sphi 0, %s105
    %s106 = sphi 0, %s103
    %s107 = sphi 0, %s106
    %s123 = sphi 0, %s107
  $region4: #{paper_decoder_block.3} parent=0 // loop_header_branch
    %12 = sbr.rel (%p10) target = $region8
  $region5: #{paper_decoder_block.3} parent=0 // loop_body
    %s14 = ssub.s32 %s9, 1
    %s15 = ssub.s32 %s9, 2
    %s22 = sadd.s32 1, %s17
    %p23 = scmp.ge.s32.totalorder %s22, 2
    %s24 = scalar_select %p23, 0, %s22
    %s25 = sadd.s32 1, %s16
    %s26 = scalar_select %p23, %s25, %s16
    %p27 = scmp.ge.s32.totalorder %s26, 2
    %s28 = scalar_select %p27, 0, %s26
    %s29 = ssub.s32 %s16, %s28
    %s30 = ssub.s32 %s17, %s24
    %s31 = sor.u32 %s29, %s30
    %p32 = scmp.eq.s32.totalorder %s31, 0
    %s34 = sadd.s32 %s33, 1
    %s35 = scalar_select %p32, %s33, %s34
    %p38 = pneg %p32
    %p39 = scmp.eq.s32.totalorder %s9, 3
    %p40 = por %p38, %p39
    %p41 = scmp.ne.s32.totalorder %s33, %s36
    %p42 = scmp.eq.s32.totalorder %s9, 0
    %p43 = por %p41, %p42
    %p44 = scmp.ne.s32.totalorder %s33, %s36
    %p45 = scmp.eq.s32.totalorder %s14, 3
    %p46 = por %p44, %p45
    %p47 = scmp.ne.s32.totalorder %s36, %s37
    %p48 = scmp.eq.s32.totalorder %s14, 0
    %p49 = por %p47, %p48
    %p50 = scmp.ne.s32.totalorder %s36, %s37
    %p51 = scmp.eq.s32.totalorder %s15, 3
    %p52 = por %p50, %p51
    %p54 = scmp.ne.s32.totalorder %s37, %s53
    %p55 = scmp.eq.s32.totalorder %s15, 0
    %p56 = por %p54, %p55
    %s58 = sadd.s32 %s57, 1
    %p61 = scmp.eq.s32.totalorder %s9, 3
    %p62 = scmp.ne.s32.totalorder %s57, %s59
    %p63 = scmp.eq.s32.totalorder %s9, 0
    %p64 = por %p62, %p63
    %p65 = scmp.ne.s32.totalorder %s57, %s59
    %p66 = scmp.eq.s32.totalorder %s14, 3
    %p67 = por %p65, %p66
    %p68 = scmp.ne.s32.totalorder %s59, %s60
    %p69 = scmp.eq.s32.totalorder %s14, 0
    %p70 = por %p68, %p69
    %p71 = scmp.ne.s32.totalorder %s59, %s60
    %p72 = scmp.eq.s32.totalorder %s15, 3
    %p73 = por %p71, %p72
    %p75 = scmp.ne.s32.totalorder %s60, %s74
    %p76 = scmp.eq.s32.totalorder %s15, 0
    %p77 = por %p75, %p76
    %s79 = sadd.s32 %s78, 1
    %p82 = scmp.eq.s32.totalorder %s9, 3
    %p83 = scmp.ne.s32.totalorder %s78, %s80
    %p84 = scmp.eq.s32.totalorder %s9, 0
    %p85 = por %p83, %p84
    %p86 = scmp.ne.s32.totalorder %s78, %s80
    %p87 = scmp.eq.s32.totalorder %s14, 3
    %p88 = por %p86, %p87
    %p89 = scmp.ne.s32.totalorder %s80, %s81
    %p90 = scmp.eq.s32.totalorder %s14, 0
    %p91 = por %p89, %p90
    %p92 = scmp.ne.s32.totalorder %s80, %s81
    %p93 = scmp.eq.s32.totalorder %s15, 3
    %p94 = por %p92, %p93
    %p96 = scmp.ne.s32.totalorder %s81, %s95
    %p97 = scmp.eq.s32.totalorder %s15, 0
    %p98 = por %p96, %p97
    %s99 = ssub.s32 %s16, %s28
    %s100 = ssub.s32 %s17, %s24
    %s101 = sor.u32 %s99, %s100
    %p102 = scmp.eq.s32.totalorder %s101, 0
    %s104 = sadd.s32 %s103, 1
    %s105 = scalar_select %p102, %s103, %s104
    %p108 = pneg %p102
    %p109 = scmp.eq.s32.totalorder %s9, 3
    %p110 = por %p108, %p109
    %p111 = scmp.ne.s32.totalorder %s103, %s106
    %p112 = scmp.eq.s32.totalorder %s9, 0
    %p113 = por %p111, %p112
    %p114 = scmp.ne.s32.totalorder %s103, %s106
    %p115 = scmp.eq.s32.totalorder %s14, 3
    %p116 = por %p114, %p115
    %p117 = scmp.ne.s32.totalorder %s106, %s107
    %p118 = scmp.eq.s32.totalorder %s14, 0
    %p119 = por %p117, %p118
    %p120 = scmp.ne.s32.totalorder %s106, %s107
    %p121 = scmp.eq.s32.totalorder %s15, 3
    %p122 = por %p120, %p121
    %p124 = scmp.ne.s32.totalorder %s107, %s123
    %p125 = scmp.eq.s32.totalorder %s15, 0
    %p126 = por %p124, %p125
    %p127 = scmp.le.s32.totalorder 1, %s9
    %p128 = scmp.lt.s32.totalorder %s9, 5
    %p129 = pnand %p127, %p128
    %p130 = pneg %p129
    // Predicated region
    $region9: #{paper_decoder_block.3} parent=5 // pred_check
      _
    $region10: #{paper_decoder_block.3} parent=5 // pred_check_branch
      %132 = sbr.rel (%p129) target = $region12
    $region11: #{paper_decoder_block.3} parent=5 // pred_region
      %s133 = ssub.s32 %s9, 1
      // Predicated region
      $region13: #{paper_decoder_block.3} parent=11 // pred_check
        %p134 = pneg %p70
      $region14: #{paper_decoder_block.3} parent=11 // pred_check_branch
        %136 = sbr.rel (%p134) target = $region16
      $region15: #{paper_decoder_block.3} parent=11 // pred_region
        _
      $region16: #{paper_decoder_block.3} parent=11 // pred_fallthru
        _
      // Predicated region
      $region17: #{paper_decoder_block.3} parent=11 // pred_check
        %p137 = pneg %p91
      $region18: #{paper_decoder_block.3} parent=11 // pred_check_branch
        %139 = sbr.rel (%p137) target = $region20
      $region19: #{paper_decoder_block.3} parent=11 // pred_region
        _
      $region20: #{paper_decoder_block.3} parent=11 // pred_fallthru
        _
    $region12: #{paper_decoder_block.3} parent=5 // pred_fallthru
      _
    %p140 = scmp.lt.s32.totalorder %s9, 4
    // Predicated region
    $region21: #{paper_decoder_block.3} parent=5 // pred_check
      %p141 = pneg %p140
    $region22: #{paper_decoder_block.3} parent=5 // pred_check_branch
      %143 = sbr.rel (%p141) target = $region24
    $region23: #{paper_decoder_block.3} parent=5 // pred_region
      // Predicated region
      $region25: #{paper_decoder_block.3} parent=23 // pred_check
        %p144 = pneg %p43
      $region26: #{paper_decoder_block.3} parent=23 // pred_check_branch
        %146 = sbr.rel (%p144) target = $region28
      $region27: #{paper_decoder_block.3} parent=23 // pred_region
        %s147 = smul.u32 16, %s17
        %p148 = scmp.lt.s32.totalorder %s16, 1
        %s149 = scalar_select %p148, %s16, 1
        %p150 = scmp.lt.s32.totalorder %s147, 31
        %s151 = scalar_select %p150, %s147, 31
        %s152 = smul.addr %s149, 32
        %s153 = sadd.s32 %s151, %s152
        %s154 = smul.addr %s153, 4
        %s155 = scalar_lea.vmem %s0, %s154
        %s156 = smul.u32 16, %s17
      $region28: #{paper_decoder_block.3} parent=23 // pred_fallthru
        _
    $region24: #{paper_decoder_block.3} parent=5 // pred_fallthru
      _
    %p157 = scmp.le.s32.totalorder 1, %s9
    %p158 = scmp.lt.s32.totalorder %s9, 5
    %p159 = pnand %p157, %p158
    %p160 = pneg %p159
    // Predicated region
    $region29: #{paper_decoder_block.3} parent=5 // pred_check
      _
    $region30: #{paper_decoder_block.3} parent=5 // pred_check_branch
      %162 = sbr.rel (%p159) target = $region32
    $region31: #{paper_decoder_block.3} parent=5 // pred_region
      %s163 = ssub.s32 %s9, 1
      %s164 = smul.u32 16, %s19
      %p165 = scmp.lt.s32.totalorder %s18, 1
      %s166 = scalar_select %p165, %s18, 1
      %p167 = scmp.lt.s32.totalorder %s164, 31
      %s168 = scalar_select %p167, %s164, 31
      %s169 = smul.addr %s166, 32
      %s170 = sadd.s32 %s168, %s169
      %s171 = smul.addr %s170, 4
      %s172 = scalar_lea.vmem %s0, %s171
      %p173 = pneg %p49
      %p174 = pneg %p46
      %p175 = pneg %p70
      %p176 = pneg %p67
      %p177 = pneg %p91
      %p178 = pneg %p88
      %p179 = pneg %p119
      %p180 = pneg %p116
      %s181 = smul.u32 16, %s19
      %p182 = scmp.lt.s32.totalorder %s18, 1
      %s183 = scalar_select %p182, %s18, 1
      %p184 = scmp.lt.s32.totalorder %s181, 31
      %s185 = scalar_select %p184, %s181, 31
      %s186 = smul.addr %s183, 32
      %s187 = sadd.s32 %s185, %s186
      %s188 = smul.addr %s187, 8
      %s189 = scalar_lea.vmem %s3, %s188
      %s190 = smul.u32 16, %s19
      %p191 = scmp.lt.s32.totalorder %s18, 1
      %s192 = scalar_select %p191, %s18, 1
      %p193 = scmp.lt.s32.totalorder %s190, 31
      %s194 = scalar_select %p193, %s190, 31
      %s195 = smul.addr %s192, 32
      %s196 = sadd.s32 %s194, %s195
      %s197 = smul.addr %s196, 4
      %s198 = scalar_lea.vmem %s0, %s197
      %s199 = smul.u32 16, %s19
      %s200 = smul.u32 16, %s19
      %p201 = scmp.lt.s32.totalorder %s18, 1
      %s202 = scalar_select %p201, %s18, 1
      %p203 = scmp.lt.s32.totalorder %s200, 31
      %s204 = scalar_select %p203, %s200, 31
      %s205 = smul.addr %s202, 32
      %s206 = sadd.s32 %s204, %s205
      %s207 = smul.addr %s206, 8
      %s208 = scalar_lea.vmem %s3, %s207
      %s209 = smul.u32 16, %s19
      %v210 = vld [vmem:[%s198] sm:$0xf]
      %v211 = vld [vmem:[%s198 + $0x4] sm:$0xf]
      %v212 = vld [vmem:[%s198 + $0x8] sm:$0xf]
      %v213 = vld [vmem:[%s198 + $0xc] sm:$0xf]
      %v214 = vld [vmem:[%s198 + $0x10] sm:$0xf]
      %v215 = vld [vmem:[%s198 + $0x14] sm:$0xf]
      %v216 = vld [vmem:[%s198 + $0x18] sm:$0xf]
      %v217 = vld [vmem:[%s198 + $0x1c] sm:$0xf]
      %v218 = vld [vmem:[%s198 + $0x20] sm:$0xf]
      %v219 = vld [vmem:[%s198 + $0x24] sm:$0xf]
      %v220 = vld [vmem:[%s198 + $0x28] sm:$0xf]
      %v221 = vld [vmem:[%s198 + $0x2c] sm:$0xf]
      %v222 = vld [vmem:[%s198 + $0x30] sm:$0xf]
      %v223 = vld [vmem:[%s198 + $0x34] sm:$0xf]
      %v224 = vld [vmem:[%s198 + $0x38] sm:$0xf]
      %v225 = vld [vmem:[%s198 + $0x3c] sm:$0xf]
      %v226 = vunpack.c.l.bf16 %v210
      %v227 = vunpack.c.l.bf16 %v211
      %v228 = vunpack.c.l.bf16 %v212
      %v229 = vunpack.c.l.bf16 %v213
      %v230 = vunpack.c.l.bf16 %v214
      %v231 = vunpack.c.l.bf16 %v215
      %v232 = vunpack.c.l.bf16 %v216
      %v233 = vunpack.c.l.bf16 %v217
      %v234 = vunpack.c.l.bf16 %v218
      %v235 = vunpack.c.l.bf16 %v219
      %v236 = vunpack.c.l.bf16 %v220
      %v237 = vunpack.c.l.bf16 %v221
      %v238 = vunpack.c.l.bf16 %v222
      %v239 = vunpack.c.l.bf16 %v223
      %v240 = vunpack.c.l.bf16 %v224
      %v241 = vunpack.c.l.bf16 %v225
      %v242 = vld [vmem:[%s1] sm:$0x1]
      %v244 = vlaneseq
      %v245 = vshrl.u32 %v244, 7
      %v246 = vsub.s32 0, %v245
      %v247 = vrot.slane %v242, %v246
      %v249 = vmul.f32 %v226, %v247
      %v250 = vmul.f32 %v227, %v247
      %v251 = vmul.f32 %v228, %v247
      %v252 = vmul.f32 %v229, %v247
      %v253 = vmul.f32 %v230, %v247
      %v254 = vmul.f32 %v231, %v247
      %v255 = vmul.f32 %v232, %v247
      %v256 = vmul.f32 %v233, %v247
      %v257 = vmul.f32 %v234, %v247
      %v258 = vmul.f32 %v235, %v247
      %v259 = vmul.f32 %v236, %v247
      %v260 = vmul.f32 %v237, %v247
      %v261 = vmul.f32 %v238, %v247
      %v262 = vmul.f32 %v239, %v247
      %v263 = vmul.f32 %v240, %v247
      %v264 = vmul.f32 %v241, %v247
      %v265 = vld [vmem:[%s2] sm:$0x1]
      %v267 = vlaneseq
      %v268 = vshrl.u32 %v267, 7
      %v269 = vsub.s32 0, %v268
      %v270 = vrot.slane %v265, %v269
      %v272 = vadd.f32 %v249, %v270
      %v273 = vadd.f32 %v250, %v270
      %v274 = vadd.f32 %v251, %v270
      %v275 = vadd.f32 %v252, %v270
      %v276 = vadd.f32 %v253, %v270
      %v277 = vadd.f32 %v254, %v270
      %v278 = vadd.f32 %v255, %v270
      %v279 = vadd.f32 %v256, %v270
      %v280 = vadd.f32 %v257, %v270
      %v281 = vadd.f32 %v258, %v270
      %v282 = vadd.f32 %v259, %v270
      %v283 = vadd.f32 %v260, %v270
      %v284 = vadd.f32 %v261, %v270
      %v285 = vadd.f32 %v262, %v270
      %v286 = vadd.f32 %v263, %v270
      %v287 = vadd.f32 %v264, %v270
      %v288 = vmul.f32 %v272, 0.2
      %v289 = vmul.f32 %v273, 0.2
      %v290 = vmul.f32 %v274, 0.2
      %v291 = vmul.f32 %v275, 0.2
      %v292 = vmul.f32 %v276, 0.2
      %v293 = vmul.f32 %v277, 0.2
      %v294 = vmul.f32 %v278, 0.2
      %v295 = vmul.f32 %v279, 0.2
      %v296 = vmul.f32 %v280, 0.2
      %v297 = vmul.f32 %v281, 0.2
      %v298 = vmul.f32 %v282, 0.2
      %v299 = vmul.f32 %v283, 0.2
      %v300 = vmul.f32 %v284, 0.2
      %v301 = vmul.f32 %v285, 0.2
      %v302 = vmul.f32 %v286, 0.2
      %v303 = vmul.f32 %v287, 0.2
      %v304 = vmax.f32 %v272, %v288
      %v305 = vmax.f32 %v273, %v289
      %v306 = vmax.f32 %v274, %v290
      %v307 = vmax.f32 %v275, %v291
      %v308 = vmax.f32 %v276, %v292
      %v309 = vmax.f32 %v277, %v293
      %v310 = vmax.f32 %v278, %v294
      %v311 = vmax.f32 %v279, %v295
      %v312 = vmax.f32 %v280, %v296
      %v313 = vmax.f32 %v281, %v297
      %v314 = vmax.f32 %v282, %v298
      %v315 = vmax.f32 %v283, %v299
      %v316 = vmax.f32 %v284, %v300
      %v317 = vmax.f32 %v285, %v301
      %v318 = vmax.f32 %v286, %v302
      %v319 = vmax.f32 %v287, %v303
      %vm320 = vcmask 130048
      %321 = vst.msk [vmem:[%s208] sm:$0xff] %vm320, %v304
      %322 = vst.msk [vmem:[%s208 + $0x8] sm:$0xff] %vm320, %v305
      %323 = vst.msk [vmem:[%s208 + $0x10] sm:$0xff] %vm320, %v306
      %324 = vst.msk [vmem:[%s208 + $0x18] sm:$0xff] %vm320, %v307
      %325 = vst.msk [vmem:[%s208 + $0x20] sm:$0xff] %vm320, %v308
      %326 = vst.msk [vmem:[%s208 + $0x28] sm:$0xff] %vm320, %v309
      %327 = vst.msk [vmem:[%s208 + $0x30] sm:$0xff] %vm320, %v310
      %328 = vst.msk [vmem:[%s208 + $0x38] sm:$0xff] %vm320, %v311
      %329 = vst.msk [vmem:[%s208 + $0x40] sm:$0xff] %vm320, %v312
      %330 = vst.msk [vmem:[%s208 + $0x48] sm:$0xff] %vm320, %v313
      %331 = vst.msk [vmem:[%s208 + $0x50] sm:$0xff] %vm320, %v314
      %332 = vst.msk [vmem:[%s208 + $0x58] sm:$0xff] %vm320, %v315
      %333 = vst.msk [vmem:[%s208 + $0x60] sm:$0xff] %vm320, %v316
      %334 = vst.msk [vmem:[%s208 + $0x68] sm:$0xff] %vm320, %v317
      %335 = vst.msk [vmem:[%s208 + $0x70] sm:$0xff] %vm320, %v318
      %336 = vst.msk [vmem:[%s208 + $0x78] sm:$0xff] %vm320, %v319
      %s337 = smul.u32 16, %s19
      %p338 = scmp.lt.s32.totalorder %s18, 1
      %s339 = scalar_select %p338, %s18, 1
      %p340 = scmp.lt.s32.totalorder %s337, 31
      %s341 = scalar_select %p340, %s337, 31
      %s342 = smul.addr %s339, 32
      %s343 = sadd.s32 %s341, %s342
      %s344 = smul.addr %s343, 8
      %s345 = scalar_lea.vmem %s3, %s344
      // Predicated region
      $region33: #{paper_decoder_block.3} parent=31 // pred_check
        %p346 = pneg %p116
      $region34: #{paper_decoder_block.3} parent=31 // pred_check_branch
        %348 = sbr.rel (%p346) target = $region36
      $region35: #{paper_decoder_block.3} parent=31 // pred_region
        %s349 = smul.u32 16, %s19
      $region36: #{paper_decoder_block.3} parent=31 // pred_fallthru
        _
    $region32: #{paper_decoder_block.3} parent=5 // pred_fallthru
      _
    %p350 = scmp.le.s32.totalorder 2, %s9
    // Predicated region
    $region37: #{paper_decoder_block.3} parent=5 // pred_check
      %p351 = pneg %p350
    $region38: #{paper_decoder_block.3} parent=5 // pred_check_branch
      %353 = sbr.rel (%p351) target = $region40
    $region39: #{paper_decoder_block.3} parent=5 // pred_region
      %s354 = ssub.s32 %s9, 2
      // Predicated region
      $region41: #{paper_decoder_block.3} parent=39 // pred_check
        %p355 = pneg %p122
      $region42: #{paper_decoder_block.3} parent=39 // pred_check_branch
        %357 = sbr.rel (%p355) target = $region44
      $region43: #{paper_decoder_block.3} parent=39 // pred_region
        %s358 = smul.u32 16, %s21
        %p359 = scmp.lt.s32.totalorder %s20, 1
        %s360 = scalar_select %p359, %s20, 1
        %p361 = scmp.lt.s32.totalorder %s358, 31
        %s362 = scalar_select %p361, %s358, 31
        %s363 = smul.addr %s360, 32
        %s364 = sadd.s32 %s362, %s363
        %s365 = smul.addr %s364, 8
        %s366 = scalar_lea.vmem %s3, %s365
      $region44: #{paper_decoder_block.3} parent=39 // pred_fallthru
        _
    $region40: #{paper_decoder_block.3} parent=5 // pred_fallthru
      _
  $region6: #{paper_decoder_block.3} parent=0 // loop_footer
    %s13 = sadd.s32 1, %s9
  $region7: #{paper_decoder_block.3} parent=0 // loop_footer_branch
    %8 = sbr.rel target = $region3
  $region8: #{paper_decoder_block.3} parent=0 // loop_exit
    _

// kernel: paper_decoder_block.2
$region0: #{paper_decoder_block.2}
  #allocation0 [shape = 'u32[]', space=smem, size = 0x4, offset = 0x4, fixed_abs, tag = 'smem constant byte address 0x4 - core index']
  #allocation1 [shape = 'u32[144,128]{1,0:T(1,128)}', space=vmem, size = 0x12000, scoped, tag = 'internal scratch']
  %s0 = inlined_call_operand.vmem [shape: bf16[2,17,17,8], index: 0, kind: input, shape index: {}]
  %s1 = inlined_call_operand.vmem [shape: bf16[32,16], index: 1, kind: input, shape index: {}]
  %s2 = inlined_call_operand.vmem [shape: bf16[2,256,16], index: 2, kind: output, shape index: {0}]
  %s3 = inlined_call_operand.vmem [shape: f32[4,2,16], index: 3, kind: output, shape index: {1}]
  %4 = xla_tuple %s2, %s3
  %s5 = sld [smem:[#allocation0]]
  $region49: #{paper_decoder_block.2} parent=0
    _
  %s7 = ssub.s32 1, %s5
  %s8 = scalar_select 0, %s7, %s5
  loop: start=0, step=1, limit=6
  $region2: #{paper_decoder_block.2} parent=0 // loop_pre_header
    _
  $region3: #{paper_decoder_block.2} parent=0 // loop_header
    %s10 = sphi 0, %s14
    %p11 = scmp.ge.s32.totalorder %s10, 6
    %s17 = sphi 0, %s29
    %s18 = sphi 0, %s25
    %s19 = sphi 0, %s17
    %s20 = sphi 0, %s18
    %s21 = sphi 0, %s19
    %s22 = sphi 0, %s20
    %s32 = sphi 0, %s34
    %s35 = sphi 0, %s32
    %s36 = sphi 0, %s35
    %s52 = sphi 0, %s36
    %s56 = sphi 0, %s56
    %s58 = sphi 0, %s56
    %s59 = sphi 0, %s58
    %s73 = sphi 0, %s59
    %s81 = sphi 0, %s83
    %s84 = sphi 0, %s81
    %s85 = sphi 0, %s84
    %s101 = sphi 0, %s85
    %s111 = sphi 0, %s113
    %s114 = sphi 0, %s111
    %s115 = sphi 0, %s114
    %s131 = sphi 0, %s115
  $region4: #{paper_decoder_block.2} parent=0 // loop_header_branch
    %13 = sbr.rel (%p11) target = $region8
  $region5: #{paper_decoder_block.2} parent=0 // loop_body
    %s15 = ssub.s32 %s10, 1
    %s16 = ssub.s32 %s10, 2
    %s23 = sadd.s32 1, %s18
    %p24 = scmp.ge.s32.totalorder %s23, 2
    %s25 = scalar_select %p24, 0, %s23
    %s26 = sadd.s32 1, %s17
    %s27 = scalar_select %p24, %s26, %s17
    %p28 = scmp.ge.s32.totalorder %s27, 2
    %s29 = scalar_select %p28, 0, %s27
    %s30 = ssub.s32 %s17, %s29
    %p31 = scmp.eq.s32.totalorder %s30, 0
    %s33 = sadd.s32 %s32, 1
    %s34 = scalar_select %p31, %s32, %s33
    %p37 = pneg %p31
    %p38 = scmp.eq.s32.totalorder %s10, 3
    %p39 = por %p37, %p38
    %p40 = scmp.ne.s32.totalorder %s32, %s35
    %p41 = scmp.eq.s32.totalorder %s10, 0
    %p42 = por %p40, %p41
    %p43 = scmp.ne.s32.totalorder %s32, %s35
    %p44 = scmp.eq.s32.totalorder %s15, 3
    %p45 = por %p43, %p44
    %p46 = scmp.ne.s32.totalorder %s35, %s36
    %p47 = scmp.eq.s32.totalorder %s15, 0
    %p48 = por %p46, %p47
    %p49 = scmp.ne.s32.totalorder %s35, %s36
    %p50 = scmp.eq.s32.totalorder %s16, 3
    %p51 = por %p49, %p50
    %p53 = scmp.ne.s32.totalorder %s36, %s52
    %p54 = scmp.eq.s32.totalorder %s16, 0
    %p55 = por %p53, %p54
    %s57 = sadd.s32 %s56, 1
    %p60 = scmp.eq.s32.totalorder %s10, 3
    %p61 = scmp.ne.s32.totalorder %s56, %s58
    %p62 = scmp.eq.s32.totalorder %s10, 0
    %p63 = por %p61, %p62
    %p64 = scmp.ne.s32.totalorder %s56, %s58
    %p65 = scmp.eq.s32.totalorder %s15, 3
    %p66 = por %p64, %p65
    %p67 = scmp.ne.s32.totalorder %s58, %s59
    %p68 = scmp.eq.s32.totalorder %s15, 0
    %p69 = por %p67, %p68
    %p70 = scmp.ne.s32.totalorder %s58, %s59
    %p71 = scmp.eq.s32.totalorder %s16, 3
    %p72 = por %p70, %p71
    %p74 = scmp.ne.s32.totalorder %s59, %s73
    %p75 = scmp.eq.s32.totalorder %s16, 0
    %p76 = por %p74, %p75
    %s77 = ssub.s32 %s17, %s29
    %s78 = ssub.s32 %s18, %s25
    %s79 = sor.u32 %s77, %s78
    %p80 = scmp.eq.s32.totalorder %s79, 0
    %s82 = sadd.s32 %s81, 1
    %s83 = scalar_select %p80, %s81, %s82
    %p86 = pneg %p80
    %p87 = scmp.eq.s32.totalorder %s10, 3
    %p88 = por %p86, %p87
    %p89 = scmp.ne.s32.totalorder %s81, %s84
    %p90 = scmp.eq.s32.totalorder %s10, 0
    %p91 = por %p89, %p90
    %p92 = scmp.ne.s32.totalorder %s81, %s84
    %p93 = scmp.eq.s32.totalorder %s15, 3
    %p94 = por %p92, %p93
    %p95 = scmp.ne.s32.totalorder %s84, %s85
    %p96 = scmp.eq.s32.totalorder %s15, 0
    %p97 = por %p95, %p96
    %p98 = scmp.ne.s32.totalorder %s84, %s85
    %p99 = scmp.eq.s32.totalorder %s16, 3
    %p100 = por %p98, %p99
    %p102 = scmp.ne.s32.totalorder %s85, %s101
    %p103 = scmp.eq.s32.totalorder %s16, 0
    %p104 = por %p102, %p103
    %s105 = smul.u32 %s17, 2
    %s106 = sadd.s32 %s105, %s18
    %s107 = smul.u32 %s29, 2
    %s108 = sadd.s32 %s107, %s25
    %s109 = ssub.s32 %s106, %s108
    %p110 = scmp.eq.s32.totalorder %s109, 0
    %s112 = sadd.s32 %s111, 1
    %s113 = scalar_select %p110, %s111, %s112
    %p116 = pneg %p110
    %p117 = scmp.eq.s32.totalorder %s10, 3
    %p118 = por %p116, %p117
    %p119 = scmp.ne.s32.totalorder %s111, %s114
    %p120 = scmp.eq.s32.totalorder %s10, 0
    %p121 = por %p119, %p120
    %p122 = scmp.ne.s32.totalorder %s111, %s114
    %p123 = scmp.eq.s32.totalorder %s15, 3
    %p124 = por %p122, %p123
    %p125 = scmp.ne.s32.totalorder %s114, %s115
    %p126 = scmp.eq.s32.totalorder %s15, 0
    %p127 = por %p125, %p126
    %p128 = scmp.ne.s32.totalorder %s114, %s115
    %p129 = scmp.eq.s32.totalorder %s16, 3
    %p130 = por %p128, %p129
    %p132 = scmp.ne.s32.totalorder %s115, %s131
    %p133 = scmp.eq.s32.totalorder %s16, 0
    %p134 = por %p132, %p133
    %p135 = scmp.le.s32.totalorder 1, %s10
    %p136 = scmp.lt.s32.totalorder %s10, 5
    %p137 = pnand %p135, %p136
    %p138 = pneg %p137
    // Predicated region
    $region9: #{paper_decoder_block.2} parent=5 // pred_check
      _
    $region10: #{paper_decoder_block.2} parent=5 // pred_check_branch
      %140 = sbr.rel (%p137) target = $region12
    $region11: #{paper_decoder_block.2} parent=5 // pred_region
      %s141 = ssub.s32 %s10, 1
      // Predicated region
      $region13: #{paper_decoder_block.2} parent=11 // pred_check
        %p142 = pneg %p69
      $region14: #{paper_decoder_block.2} parent=11 // pred_check_branch
        %144 = sbr.rel (%p142) target = $region16
      $region15: #{paper_decoder_block.2} parent=11 // pred_region
        _
      $region16: #{paper_decoder_block.2} parent=11 // pred_fallthru
        _
    $region12: #{paper_decoder_block.2} parent=5 // pred_fallthru
      _
    %p145 = scmp.lt.s32.totalorder %s10, 4
    // Predicated region
    $region17: #{paper_decoder_block.2} parent=5 // pred_check
      %p146 = pneg %p145
    $region18: #{paper_decoder_block.2} parent=5 // pred_check_branch
      %148 = sbr.rel (%p146) target = $region20
    $region19: #{paper_decoder_block.2} parent=5 // pred_region
      // Predicated region
      $region21: #{paper_decoder_block.2} parent=19 // pred_check
        %p149 = pneg %p42
      $region22: #{paper_decoder_block.2} parent=19 // pred_check_branch
        %151 = sbr.rel (%p149) target = $region24
      $region23: #{paper_decoder_block.2} parent=19 // pred_region
        %p152 = scmp.lt.s32.totalorder %s17, 1
        %s153 = scalar_select %p152, %s17, 1
        %s154 = smul.addr %s153, 51
        %s155 = smul.addr %s154, 4
        %s156 = scalar_lea.vmem %s0, %s155
      $region24: #{paper_decoder_block.2} parent=19 // pred_fallthru
        _
    $region20: #{paper_decoder_block.2} parent=5 // pred_fallthru
      _
    %p157 = scmp.le.s32.totalorder 1, %s10
    %p158 = scmp.lt.s32.totalorder %s10, 5
    %p159 = pnand %p157, %p158
    %p160 = pneg %p159
    // Predicated region
    $region25: #{paper_decoder_block.2} parent=5 // pred_check
      _
    $region26: #{paper_decoder_block.2} parent=5 // pred_check_branch
      %162 = sbr.rel (%p159) target = $region28
    $region27: #{paper_decoder_block.2} parent=5 // pred_region
      %s163 = ssub.s32 %s10, 1
      %p164 = scmp.lt.s32.totalorder %s19, 1
      %s165 = scalar_select %p164, %s19, 1
      %s166 = smul.addr %s165, 51
      %s167 = smul.addr %s166, 4
      %s168 = scalar_lea.vmem %s0, %s167
      %p169 = pneg %p48
      %p170 = pneg %p45
      %p171 = pneg %p69
      %p172 = pneg %p66
      %p173 = pneg %p97
      %p174 = pneg %p94
      %s175 = smul.u32 16, %s20
      %p176 = scmp.lt.s32.totalorder %s19, 1
      %s177 = scalar_select %p176, %s19, 1
      %p178 = scmp.lt.s32.totalorder %s175, 31
      %s179 = scalar_select %p178, %s175, 31
      %s180 = smul.addr %s177, 32
      %s181 = sadd.s32 %s179, %s180
      %s182 = smul.addr %s181, 4
      %s183 = scalar_lea.vmem %s2, %s182
      %p184 = pneg %p127
      %p185 = pneg %p124
      %s186 = smul.u32 %s19, 2
      %s187 = sadd.s32 %s186, %s20
      %p188 = scmp.lt.s32.totalorder %s187, 3
      %s189 = scalar_select %p188, %s187, 3
      %s190 = smul.addr %s189, 2
      %s191 = scalar_lea.vmem %s3, %s190
      %p192 = scmp.lt.s32.totalorder %s19, 1
      %s193 = scalar_select %p192, %s19, 1
      %s194 = smul.addr %s193, 51
      %s195 = smul.addr %s194, 4
      %s196 = scalar_lea.vmem %s0, %s195
      %s197 = smul.u32 16, %s20
      %p198 = scmp.lt.s32.totalorder %s19, 1
      %s199 = scalar_select %p198, %s19, 1
      %p200 = scmp.lt.s32.totalorder %s197, 31
      %s201 = scalar_select %p200, %s197, 31
      %s202 = smul.addr %s199, 32
      %s203 = sadd.s32 %s201, %s202
      %s204 = smul.addr %s203, 4
      %s205 = scalar_lea.vmem %s2, %s204
      %s206 = smul.u32 16, %s20
      %s207 = smul.u32 %s19, 2
      %s208 = sadd.s32 %s207, %s20
      %p209 = scmp.lt.s32.totalorder %s208, 3
      %s210 = scalar_select %p209, %s208, 3
      %s211 = smul.addr %s210, 2
      %s212 = scalar_lea.vmem %s3, %s211
      %s213 = smul.u32 %s19, 2
      %s214 = sadd.s32 %s213, %s20
      %s216 = smul.u32 %s20, 8
      %s217 = smul.u32 %s216, 3
      %s218 = smul.addr %s217, 4
      %s219 = scalar_lea.vmem %s196, %s218
      %v220 = vld [vmem:[%s219] sm:$0xf]
      %v221 = vld [vmem:[%s219 + $0x4] sm:$0xf]
      %v222 = vld [vmem:[%s219 + $0x8] sm:$0x1]
      %v223 = vld [vmem:[%s219 + $0xc] sm:$0xf]
      %v224 = vld [vmem:[%s219 + $0x10] sm:$0xf]
      %v225 = vld [vmem:[%s219 + $0x14] sm:$0x1]
      %v226 = vld [vmem:[%s219 + $0x18] sm:$0xf]
      %v227 = vld [vmem:[%s219 + $0x1c] sm:$0xf]
      %v228 = vld [vmem:[%s219 + $0x20] sm:$0x1]
      %v229 = vld [vmem:[%s219 + $0x24] sm:$0xf]
      %v230 = vld [vmem:[%s219 + $0x28] sm:$0xf]
      %v231 = vld [vmem:[%s219 + $0x2c] sm:$0x1]
      %v232 = vld [vmem:[%s219 + $0x30] sm:$0xf]
      %v233 = vld [vmem:[%s219 + $0x34] sm:$0xf]
      %v234 = vld [vmem:[%s219 + $0x38] sm:$0x1]
      %v235 = vld [vmem:[%s219 + $0x3c] sm:$0xf]
      %v236 = vld [vmem:[%s219 + $0x40] sm:$0xf]
      %v237 = vld [vmem:[%s219 + $0x44] sm:$0x1]
      %v238 = vld [vmem:[%s219 + $0x48] sm:$0xf]
      %v239 = vld [vmem:[%s219 + $0x4c] sm:$0xf]
      %v240 = vld [vmem:[%s219 + $0x50] sm:$0x1]
      %v241 = vld [vmem:[%s219 + $0x54] sm:$0xf]
      %v242 = vld [vmem:[%s219 + $0x58] sm:$0xf]
      %v243 = vld [vmem:[%s219 + $0x5c] sm:$0x1]
      %v244 = vld [vmem:[%s219 + $0x60] sm:$0xf]
      %v245 = vld [vmem:[%s219 + $0x64] sm:$0xf]
      %v246 = vld [vmem:[%s219 + $0x68] sm:$0x1]
      %v247 = vld [vmem:[%s1] sm:$0xf]
      %vm248 = vsmask.f32 3328
      %vm249 = vsmask.f32 7440
      %vm250 = vmor %vm248, %vm249
      %v252 = vshrl.u32 %v220, 16
      %v254 = vrot.slane %v252, 4
      %v255 = vshll.u32 %v220, 16
      %v257 = vrot.slane %v255, 5
      %v258 = vor.u32 %v254, %v257
      %v259 = vrot.slane %v258, 4
      %v261 = vshll.u32 %v221, 16
      %v263 = vrot.slane %v261, 5
      %v264 = vsel %vm250, %v259, %v263
      %v265 = vshrl.u32 %v221, 16
      %v267 = vrot.slane %v265, 4
      %v268 = vor.u32 %v267, %v263
      %v269 = vrot.slane %v268, 4
      %v271 = vshll.u32 %v222, 16
      %v273 = vrot.slane %v271, 5
      %v274 = vsel %vm250, %v269, %v273
      %v276 = vshrl.u32 %v223, 16
      %v278 = vrot.slane %v276, 4
      %v279 = vshll.u32 %v223, 16
      %v281 = vrot.slane %v279, 5
      %v282 = vor.u32 %v278, %v281
      %v283 = vrot.slane %v282, 4
      %v285 = vshll.u32 %v224, 16
      %v287 = vrot.slane %v285, 5
      %v288 = vsel %vm250, %v283, %v287
      %v289 = vshrl.u32 %v224, 16
      %v291 = vrot.slane %v289, 4
      %v292 = vor.u32 %v291, %v287
      %v293 = vrot.slane %v292, 4
      %v295 = vshll.u32 %v225, 16
      %v297 = vrot.slane %v295, 5
      %v298 = vsel %vm250, %v293, %v297
      %v300 = vshrl.u32 %v226, 16
      %v302 = vrot.slane %v300, 4
      %v303 = vshll.u32 %v226, 16
      %v305 = vrot.slane %v303, 5
      %v306 = vor.u32 %v302, %v305
      %v307 = vrot.slane %v306, 4
      %v309 = vshll.u32 %v227, 16
      %v311 = vrot.slane %v309, 5
      %v312 = vsel %vm250, %v307, %v311
      %v313 = vshrl.u32 %v227, 16
      %v315 = vrot.slane %v313, 4
      %v316 = vor.u32 %v315, %v311
      %v317 = vrot.slane %v316, 4
      %v319 = vshll.u32 %v228, 16
      %v321 = vrot.slane %v319, 5
      %v322 = vsel %vm250, %v317, %v321
      %v324 = vshrl.u32 %v229, 16
      %v326 = vrot.slane %v324, 4
      %v327 = vshll.u32 %v229, 16
      %v329 = vrot.slane %v327, 5
      %v330 = vor.u32 %v326, %v329
      %v331 = vrot.slane %v330, 4
      %v333 = vshll.u32 %v230, 16
      %v335 = vrot.slane %v333, 5
      %v336 = vsel %vm250, %v331, %v335
      %v337 = vshrl.u32 %v230, 16
      %v339 = vrot.slane %v337, 4
      %v340 = vor.u32 %v339, %v335
      %v341 = vrot.slane %v340, 4
      %v343 = vshll.u32 %v231, 16
      %v345 = vrot.slane %v343, 5
      %v346 = vsel %vm250, %v341, %v345
      %v348 = vshrl.u32 %v232, 16
      %v350 = vrot.slane %v348, 4
      %v351 = vshll.u32 %v232, 16
      %v353 = vrot.slane %v351, 5
      %v354 = vor.u32 %v350, %v353
      %v355 = vrot.slane %v354, 4
      %v357 = vshll.u32 %v233, 16
      %v359 = vrot.slane %v357, 5
      %v360 = vsel %vm250, %v355, %v359
      %v361 = vshrl.u32 %v233, 16
      %v363 = vrot.slane %v361, 4
      %v364 = vor.u32 %v363, %v359
      %v365 = vrot.slane %v364, 4
      %v367 = vshll.u32 %v234, 16
      %v369 = vrot.slane %v367, 5
      %v370 = vsel %vm250, %v365, %v369
      %v372 = vshrl.u32 %v235, 16
      %v374 = vrot.slane %v372, 4
      %v375 = vshll.u32 %v235, 16
      %v377 = vrot.slane %v375, 5
      %v378 = vor.u32 %v374, %v377
      %v379 = vrot.slane %v378, 4
      %v381 = vshll.u32 %v236, 16
      %v383 = vrot.slane %v381, 5
      %v384 = vsel %vm250, %v379, %v383
      %v385 = vshrl.u32 %v236, 16
      %v387 = vrot.slane %v385, 4
      %v388 = vor.u32 %v387, %v383
      %v389 = vrot.slane %v388, 4
      %v391 = vshll.u32 %v237, 16
      %v393 = vrot.slane %v391, 5
      %v394 = vsel %vm250, %v389, %v393
      %v396 = vshrl.u32 %v238, 16
      %v398 = vrot.slane %v396, 4
      %v399 = vshll.u32 %v238, 16
      %v401 = vrot.slane %v399, 5
      %v402 = vor.u32 %v398, %v401
      %v403 = vrot.slane %v402, 4
      %v405 = vshll.u32 %v239, 16
      %v407 = vrot.slane %v405, 5
      %v408 = vsel %vm250, %v403, %v407
      %v409 = vshrl.u32 %v239, 16
      %v411 = vrot.slane %v409, 4
      %v412 = vor.u32 %v411, %v407
      %v413 = vrot.slane %v412, 4
      %v415 = vshll.u32 %v240, 16
      %v417 = vrot.slane %v415, 5
      %v418 = vsel %vm250, %v413, %v417
      %v420 = vshrl.u32 %v241, 16
      %v422 = vrot.slane %v420, 4
      %v423 = vshll.u32 %v241, 16
      %v425 = vrot.slane %v423, 5
      %v426 = vor.u32 %v422, %v425
      %v427 = vrot.slane %v426, 4
      %v429 = vshll.u32 %v242, 16
      %v431 = vrot.slane %v429, 5
      %v432 = vsel %vm250, %v427, %v431
      %v433 = vshrl.u32 %v242, 16
      %v435 = vrot.slane %v433, 4
      %v436 = vor.u32 %v435, %v431
      %v437 = vrot.slane %v436, 4
      %v439 = vshll.u32 %v243, 16
      %v441 = vrot.slane %v439, 5
      %v442 = vsel %vm250, %v437, %v441
      %v443 = vld [vmem:[%s1 + $0x4] sm:$0xf]
      %v444 = vunpack.c.l.b16 %v264
      %v445 = vunpack.c.l.b16 %v274
      %v446 = vunpack.c.l.b16 %v288
      %v447 = vunpack.c.l.b16 %v298
      %v448 = vunpack.c.l.b16 %v312
      %v449 = vunpack.c.l.b16 %v322
      %v450 = vunpack.c.l.b16 %v336
      %v451 = vunpack.c.l.b16 %v346
      %v452 = vunpack.c.l.b16 %v360
      %v453 = vunpack.c.l.b16 %v370
      %v454 = vunpack.c.l.b16 %v384
      %v455 = vunpack.c.l.b16 %v394
      %v456 = vunpack.c.l.b16 %v408
      %v457 = vunpack.c.l.b16 %v418
      %v458 = vunpack.c.l.b16 %v432
      %v459 = vunpack.c.l.b16 %v442
      %v460 = vpack.c.b16 %v445, %v444
      %v461 = vpack.c.b16 %v447, %v446
      %v462 = vpack.c.b16 %v449, %v448
      %v463 = vpack.c.b16 %v451, %v450
      %v464 = vpack.c.b16 %v453, %v452
      %v465 = vpack.c.b16 %v455, %v454
      %v466 = vpack.c.b16 %v457, %v456
      %v467 = vpack.c.b16 %v459, %v458
      %vm468 = vcmask 64512
      %v470 = vsel %vm468, %v460, 0
      %v473 = vsel %vm468, %v461, 0
      %v476 = vsel %vm468, %v462, 0
      %v479 = vsel %vm468, %v463, 0
      %v482 = vsel %vm468, %v464, 0
      %v485 = vsel %vm468, %v465, 0
      %v488 = vsel %vm468, %v466, 0
      %v491 = vsel %vm468, %v467, 0
      %vm493 = vcmask 1043456
      %v495 = vsel %vm493, %v443, 0
      %497 = vmatprep.subr.bf16.mxu0 0
      %498 = vmatpush1.bf16.msra.mxu0 %v495
      %499 = vmatprep.subr.bf16.mxu0 0
      %500 = vmatpush1.bf16.msra.mxu0 0
      %501 = vmatprep.subr.bf16.mxu0 0
      %502 = vmatpush1.bf16.msra.mxu0 0
      %503 = vmatprep.subr.bf16.mxu0 0
      %504 = vmatpush1.bf16.msra.mxu0 0
      %505 = vmatprep.subr.bf16.mxu0 0
      %506 = vmatpush1.bf16.msra.mxu0 0
      %507 = vmatprep.subr.bf16.mxu0 0
      %508 = vmatpush1.bf16.msra.mxu0 0
      %509 = vmatprep.subr.bf16.mxu0 0
      %510 = vmatpush1.bf16.msra.mxu0 0
      %511 = vmatprep.subr.bf16.mxu0 0
      %512 = vmatpush1.bf16.msra.mxu0 0
      %513 = vmatprep.subr.bf16.mxu0 0
      %514 = vmatpush1.bf16.msra.mxu0 0
      %515 = vmatprep.subr.bf16.mxu0 0
      %516 = vmatpush1.bf16.msra.mxu0 0
      %517 = vmatprep.subr.bf16.mxu0 0
      %518 = vmatpush1.bf16.msra.mxu0 0
      %519 = vmatprep.subr.bf16.mxu0 0
      %520 = vmatpush1.bf16.msra.mxu0 0
      %521 = vmatprep.subr.bf16.mxu0 0
      %522 = vmatpush1.bf16.msra.mxu0 0
      %523 = vmatprep.subr.bf16.mxu0 0
      %524 = vmatpush1.bf16.msra.mxu0 0
      %525 = vmatprep.subr.bf16.mxu0 0
      %526 = vmatpush1.bf16.msra.mxu0 0
      %527 = vmatprep.subr.bf16.mxu0 0
      %528 = vmatpush1.bf16.msra.mxu0 0
      %529 = vmatprep.mubr.bf16.mxu0 0
      %530 = vmatmul.mubr.bf16.gmra.mrb[0].mxu0 %v470
      %v531 = vpop.f32.mrb[0].mxu0
      %v532 = vadd.f32 0.0, %v531
      %v533 = vpop.f32.mrb[0].mxu0
      %v534 = vpop.f32.mrb[0].mxu0
      %v535 = vadd.f32 0.0, %v534
      %v536 = vpop.f32.mrb[0].mxu0
      %537 = vmatprep.mubr.bf16.mxu0 0
      %538 = vmatmul.mubr.bf16.gmra.mrb[0].mxu0 %v473
      %v539 = vpop.f32.mrb[0].mxu0
      %v540 = vadd.f32 0.0, %v539
      %v541 = vpop.f32.mrb[0].mxu0
      %v542 = vpop.f32.mrb[0].mxu0
      %v543 = vadd.f32 0.0, %v542
      %v544 = vpop.f32.mrb[0].mxu0
      %545 = vmatprep.mubr.bf16.mxu0 0
      %546 = vmatmul.mubr.bf16.gmra.mrb[0].mxu0 %v476
      %v547 = vpop.f32.mrb[0].mxu0
      %v548 = vadd.f32 0.0, %v547
      %v549 = vpop.f32.mrb[0].mxu0
      %v550 = vpop.f32.mrb[0].mxu0
      %v551 = vadd.f32 0.0, %v550
      %v552 = vpop.f32.mrb[0].mxu0
      %553 = vmatprep.mubr.bf16.mxu0 0
      %554 = vmatmul.mubr.bf16.gmra.mrb[0].mxu0 %v479
      %v555 = vpop.f32.mrb[0].mxu0
      %v556 = vadd.f32 0.0, %v555
      %v557 = vpop.f32.mrb[0].mxu0
      %v558 = vpop.f32.mrb[0].mxu0
      %v559 = vadd.f32 0.0, %v558
      %v560 = vpop.f32.mrb[0].mxu0
      %561 = vmatprep.mubr.bf16.mxu0 0
      %562 = vmatmul.mubr.bf16.gmra.mrb[0].mxu0 %v482
      %v563 = vpop.f32.mrb[0].mxu0
      %v564 = vadd.f32 0.0, %v563
      %v565 = vpop.f32.mrb[0].mxu0
      %v566 = vpop.f32.mrb[0].mxu0
      %v567 = vadd.f32 0.0, %v566
      %v568 = vpop.f32.mrb[0].mxu0
      %569 = vmatprep.mubr.bf16.mxu0 0
      %570 = vmatmul.mubr.bf16.gmra.mrb[0].mxu0 %v485
      %v571 = vpop.f32.mrb[0].mxu0
      %v572 = vadd.f32 0.0, %v571
      %v573 = vpop.f32.mrb[0].mxu0
      %v574 = vpop.f32.mrb[0].mxu0
      %v575 = vadd.f32 0.0, %v574
      %v576 = vpop.f32.mrb[0].mxu0
      %577 = vmatprep.mubr.bf16.mxu0 0
      %578 = vmatmul.mubr.bf16.gmra.mrb[0].mxu0 %v488
      %v579 = vpop.f32.mrb[0].mxu0
      %v580 = vadd.f32 0.0, %v579
      %v581 = vpop.f32.mrb[0].mxu0
      %v582 = vpop.f32.mrb[0].mxu0
      %v583 = vadd.f32 0.0, %v582
      %v584 = vpop.f32.mrb[0].mxu0
      %585 = vmatprep.mubr.bf16.mxu0 0
      %586 = vmatmul.mubr.bf16.gmra.mrb[0].mxu0 %v491
      %v587 = vpop.f32.mrb[0].mxu0
      %v588 = vadd.f32 0.0, %v587
      %v589 = vpop.f32.mrb[0].mxu0
      %v590 = vpop.f32.mrb[0].mxu0
      %v591 = vadd.f32 0.0, %v590
      %v592 = vpop.f32.mrb[0].mxu0
      %593 = vdwg.mxu0
      %v610 = vunpack.c.l.b16 %v220
      %v611 = vunpack.c.l.b16 %v221
      %v612 = vunpack.c.l.b16 %v223
      %v613 = vunpack.c.l.b16 %v224
      %v614 = vunpack.c.l.b16 %v226
      %v615 = vunpack.c.l.b16 %v227
      %v616 = vunpack.c.l.b16 %v229
      %v617 = vunpack.c.l.b16 %v230
      %v618 = vunpack.c.l.b16 %v232
      %v619 = vunpack.c.l.b16 %v233
      %v620 = vunpack.c.l.b16 %v235
      %v621 = vunpack.c.l.b16 %v236
      %v622 = vunpack.c.l.b16 %v238
      %v623 = vunpack.c.l.b16 %v239
      %v624 = vunpack.c.l.b16 %v241
      %v625 = vunpack.c.l.b16 %v242
      %v626 = vpack.c.b16 %v611, %v610
      %v627 = vpack.c.b16 %v613, %v612
      %v628 = vpack.c.b16 %v615, %v614
      %v629 = vpack.c.b16 %v617, %v616
      %v630 = vpack.c.b16 %v619, %v618
      %v631 = vpack.c.b16 %v621, %v620
      %v632 = vpack.c.b16 %v623, %v622
      %v633 = vpack.c.b16 %v625, %v624
      %v635 = vsel %vm468, %v626, 0
      %v638 = vsel %vm468, %v627, 0
      %v641 = vsel %vm468, %v628, 0
      %v644 = vsel %vm468, %v629, 0
      %v647 = vsel %vm468, %v630, 0
      %v650 = vsel %vm468, %v631, 0
      %v653 = vsel %vm468, %v632, 0
      %v656 = vsel %vm468, %v633, 0
      %v659 = vsel %vm493, %v247, 0
      %661 = vmatprep.subr.bf16.mxu0 0
      %662 = vmatpush1.bf16.msra.mxu0 %v659
      %663 = vmatprep.subr.bf16.mxu0 0
      %664 = vmatpush1.bf16.msra.mxu0 0
      %665 = vmatprep.subr.bf16.mxu0 0
      %666 = vmatpush1.bf16.msra.mxu0 0
      %667 = vmatprep.subr.bf16.mxu0 0
      %668 = vmatpush1.bf16.msra.mxu0 0
      %669 = vmatprep.subr.bf16.mxu0 0
      %670 = vmatpush1.bf16.msra.mxu0 0
      %671 = vmatprep.subr.bf16.mxu0 0
      %672 = vmatpush1.bf16.msra.mxu0 0
      %673 = vmatprep.subr.bf16.mxu0 0
      %674 = vmatpush1.bf16.msra.mxu0 0
      %675 = vmatprep.subr.bf16.mxu0 0
      %676 = vmatpush1.bf16.msra.mxu0 0
      %677 = vmatprep.subr.bf16.mxu0 0
      %678 = vmatpush1.bf16.msra.mxu0 0
      %679 = vmatprep.subr.bf16.mxu0 0
      %680 = vmatpush1.bf16.msra.mxu0 0
      %681 = vmatprep.subr.bf16.mxu0 0
      %682 = vmatpush1.bf16.msra.mxu0 0
      %683 = vmatprep.subr.bf16.mxu0 0
      %684 = vmatpush1.bf16.msra.mxu0 0
      %685 = vmatprep.subr.bf16.mxu0 0
      %686 = vmatpush1.bf16.msra.mxu0 0
      %687 = vmatprep.subr.bf16.mxu0 0
      %688 = vmatpush1.bf16.msra.mxu0 0
      %689 = vmatprep.subr.bf16.mxu0 0
      %690 = vmatpush1.bf16.msra.mxu0 0
      %691 = vmatprep.subr.bf16.mxu0 0
      %692 = vmatpush1.bf16.msra.mxu0 0
      %693 = vmatprep.mubr.bf16.mxu0 0
      %694 = vmatmul.mubr.bf16.gmra.mrb[0].mxu0 %v635
      %v695 = vpop.f32.mrb[0].mxu0
      %v696 = vadd.f32 %v532, %v695
      %v697 = vpop.f32.mrb[0].mxu0
      %v698 = vpop.f32.mrb[0].mxu0
      %v699 = vadd.f32 %v535, %v698
      %v700 = vpop.f32.mrb[0].mxu0
      %701 = vmatprep.mubr.bf16.mxu0 0
      %702 = vmatmul.mubr.bf16.gmra.mrb[0].mxu0 %v638
      %v703 = vpop.f32.mrb[0].mxu0
      %v704 = vadd.f32 %v540, %v703
      %v705 = vpop.f32.mrb[0].mxu0
      %v706 = vpop.f32.mrb[0].mxu0
      %v707 = vadd.f32 %v543, %v706
      %v708 = vpop.f32.mrb[0].mxu0
      %709 = vmatprep.mubr.bf16.mxu0 0
      %710 = vmatmul.mubr.bf16.gmra.mrb[0].mxu0 %v641
      %v711 = vpop.f32.mrb[0].mxu0
      %v712 = vadd.f32 %v548, %v711
      %v713 = vpop.f32.mrb[0].mxu0
      %v714 = vpop.f32.mrb[0].mxu0
      %v715 = vadd.f32 %v551, %v714
      %v716 = vpop.f32.mrb[0].mxu0
      %717 = vmatprep.mubr.bf16.mxu0 0
      %718 = vmatmul.mubr.bf16.gmra.mrb[0].mxu0 %v644
      %v719 = vpop.f32.mrb[0].mxu0
      %v720 = vadd.f32 %v556, %v719
      %v721 = vpop.f32.mrb[0].mxu0
      %v722 = vpop.f32.mrb[0].mxu0
      %v723 = vadd.f32 %v559, %v722
      %v724 = vpop.f32.mrb[0].mxu0
      %725 = vmatprep.mubr.bf16.mxu0 0
      %726 = vmatmul.mubr.bf16.gmra.mrb[0].mxu0 %v647
      %v727 = vpop.f32.mrb[0].mxu0
      %v728 = vadd.f32 %v564, %v727
      %v729 = vpop.f32.mrb[0].mxu0
      %v730 = vpop.f32.mrb[0].mxu0
      %v731 = vadd.f32 %v567, %v730
      %v732 = vpop.f32.mrb[0].mxu0
      %733 = vmatprep.mubr.bf16.mxu0 0
      %734 = vmatmul.mubr.bf16.gmra.mrb[0].mxu0 %v650
      %v735 = vpop.f32.mrb[0].mxu0
      %v736 = vadd.f32 %v572, %v735
      %v737 = vpop.f32.mrb[0].mxu0
      %v738 = vpop.f32.mrb[0].mxu0
      %v739 = vadd.f32 %v575, %v738
      %v740 = vpop.f32.mrb[0].mxu0
      %741 = vmatprep.mubr.bf16.mxu0 0
      %742 = vmatmul.mubr.bf16.gmra.mrb[0].mxu0 %v653
      %v743 = vpop.f32.mrb[0].mxu0
      %v744 = vadd.f32 %v580, %v743
      %v745 = vpop.f32.mrb[0].mxu0
      %v746 = vpop.f32.mrb[0].mxu0
      %v747 = vadd.f32 %v583, %v746
      %v748 = vpop.f32.mrb[0].mxu0
      %749 = vmatprep.mubr.bf16.mxu0 0
      %750 = vmatmul.mubr.bf16.gmra.mrb[0].mxu0 %v656
      %v751 = vpop.f32.mrb[0].mxu0
      %v752 = vadd.f32 %v588, %v751
      %v753 = vpop.f32.mrb[0].mxu0
      %v754 = vpop.f32.mrb[0].mxu0
      %v755 = vadd.f32 %v591, %v754
      %v756 = vpop.f32.mrb[0].mxu0
      %757 = vdwg.mxu0
      %v758 = vld [vmem:[%s1 + $0x8] sm:$0xf]
      %v761 = vunpack.c.l.b16 %v244
      %v762 = vunpack.c.l.b16 %v245
      %v763 = vpack.c.b16 %v762, %v761
      %v765 = vsel %vm468, %v763, 0
      %v768 = vsel %vm493, %v758, 0
      %770 = vmatprep.subr.bf16.mxu0 0
      %771 = vmatpush1.bf16.msra.mxu0 %v768
      %772 = vmatprep.subr.bf16.mxu0 0
      %773 = vmatpush1.bf16.msra.mxu0 0
      %774 = vmatprep.subr.bf16.mxu0 0
      %775 = vmatpush1.bf16.msra.mxu0 0
      %776 = vmatprep.subr.bf16.mxu0 0
      %777 = vmatpush1.bf16.msra.mxu0 0
      %778 = vmatprep.subr.bf16.mxu0 0
      %779 = vmatpush1.bf16.msra.mxu0 0
      %780 = vmatprep.subr.bf16.mxu0 0
      %781 = vmatpush1.bf16.msra.mxu0 0
      %782 = vmatprep.subr.bf16.mxu0 0
      %783 = vmatpush1.bf16.msra.mxu0 0
      %784 = vmatprep.subr.bf16.mxu0 0
      %785 = vmatpush1.bf16.msra.mxu0 0
      %786 = vmatprep.subr.bf16.mxu0 0
      %787 = vmatpush1.bf16.msra.mxu0 0
      %788 = vmatprep.subr.bf16.mxu0 0
      %789 = vmatpush1.bf16.msra.mxu0 0
      %790 = vmatprep.subr.bf16.mxu0 0
      %791 = vmatpush1.bf16.msra.mxu0 0
      %792 = vmatprep.subr.bf16.mxu0 0
      %793 = vmatpush1.bf16.msra.mxu0 0
      %794 = vmatprep.subr.bf16.mxu0 0
      %795 = vmatpush1.bf16.msra.mxu0 0
      %796 = vmatprep.subr.bf16.mxu0 0
      %797 = vmatpush1.bf16.msra.mxu0 0
      %798 = vmatprep.subr.bf16.mxu0 0
      %799 = vmatpush1.bf16.msra.mxu0 0
      %800 = vmatprep.subr.bf16.mxu0 0
      %801 = vmatpush1.bf16.msra.mxu0 0
      %802 = vmatprep.mubr.bf16.mxu0 0
      %803 = vmatmul.mubr.bf16.gmra.mrb[0].mxu0 %v638
      %v804 = vpop.f32.mrb[0].mxu0
      %v805 = vadd.f32 0.0, %v804
      %v806 = vpop.f32.mrb[0].mxu0
      %v807 = vpop.f32.mrb[0].mxu0
      %v808 = vadd.f32 0.0, %v807
      %v809 = vpop.f32.mrb[0].mxu0
      %810 = vmatprep.mubr.bf16.mxu0 0
      %811 = vmatmul.mubr.bf16.gmra.mrb[0].mxu0 %v641
      %v812 = vpop.f32.mrb[0].mxu0
      %v813 = vadd.f32 0.0, %v812
      %v814 = vpop.f32.mrb[0].mxu0
      %v815 = vpop.f32.mrb[0].mxu0
      %v816 = vadd.f32 0.0, %v815
      %v817 = vpop.f32.mrb[0].mxu0
      %818 = vmatprep.mubr.bf16.mxu0 0
      %819 = vmatmul.mubr.bf16.gmra.mrb[0].mxu0 %v644
      %v820 = vpop.f32.mrb[0].mxu0
      %v821 = vadd.f32 0.0, %v820
      %v822 = vpop.f32.mrb[0].mxu0
      %v823 = vpop.f32.mrb[0].mxu0
      %v824 = vadd.f32 0.0, %v823
      %v825 = vpop.f32.mrb[0].mxu0
      %826 = vmatprep.mubr.bf16.mxu0 0
      %827 = vmatmul.mubr.bf16.gmra.mrb[0].mxu0 %v647
      %v828 = vpop.f32.mrb[0].mxu0
      %v829 = vadd.f32 0.0, %v828
      %v830 = vpop.f32.mrb[0].mxu0
      %v831 = vpop.f32.mrb[0].mxu0
      %v832 = vadd.f32 0.0, %v831
      %v833 = vpop.f32.mrb[0].mxu0
      %834 = vmatprep.mubr.bf16.mxu0 0
      %835 = vmatmul.mubr.bf16.gmra.mrb[0].mxu0 %v650
      %v836 = vpop.f32.mrb[0].mxu0
      %v837 = vadd.f32 0.0, %v836
      %v838 = vpop.f32.mrb[0].mxu0
      %v839 = vpop.f32.mrb[0].mxu0
      %v840 = vadd.f32 0.0, %v839
      %v841 = vpop.f32.mrb[0].mxu0
      %842 = vmatprep.mubr.bf16.mxu0 0
      %843 = vmatmul.mubr.bf16.gmra.mrb[0].mxu0 %v653
      %v844 = vpop.f32.mrb[0].mxu0
      %v845 = vadd.f32 0.0, %v844
      %v846 = vpop.f32.mrb[0].mxu0
      %v847 = vpop.f32.mrb[0].mxu0
      %v848 = vadd.f32 0.0, %v847
      %v849 = vpop.f32.mrb[0].mxu0
      %850 = vmatprep.mubr.bf16.mxu0 0
      %851 = vmatmul.mubr.bf16.gmra.mrb[0].mxu0 %v656
      %v852 = vpop.f32.mrb[0].mxu0
      %v853 = vadd.f32 0.0, %v852
      %v854 = vpop.f32.mrb[0].mxu0
      %v855 = vpop.f32.mrb[0].mxu0
      %v856 = vadd.f32 0.0, %v855
      %v857 = vpop.f32.mrb[0].mxu0
      %858 = vmatprep.mubr.bf16.mxu0 0
      %859 = vmatmul.mubr.bf16.gmra.mrb[0].mxu0 %v765
      %v860 = vpop.f32.mrb[0].mxu0
      %v861 = vadd.f32 0.0, %v860
      %v862 = vpop.f32.mrb[0].mxu0
      %v863 = vpop.f32.mrb[0].mxu0
      %v864 = vadd.f32 0.0, %v863
      %v865 = vpop.f32.mrb[0].mxu0
      %866 = vdwg.mxu0
      %v867 = vadd.f32 %v696, %v805
      %v868 = vadd.f32 %v699, %v808
      %v869 = vadd.f32 %v704, %v813
      %v870 = vadd.f32 %v707, %v816
      %v871 = vadd.f32 %v712, %v821
      %v872 = vadd.f32 %v715, %v824
      %v873 = vadd.f32 %v720, %v829
      %v874 = vadd.f32 %v723, %v832
      %v875 = vadd.f32 %v728, %v837
      %v876 = vadd.f32 %v731, %v840
      %v877 = vadd.f32 %v736, %v845
      %v878 = vadd.f32 %v739, %v848
      %v879 = vadd.f32 %v744, %v853
      %v880 = vadd.f32 %v747, %v856
      %v881 = vadd.f32 %v752, %v861
      %v882 = vadd.f32 %v755, %v864
      %v884 = vshrl.u32 %v244, 16
      %v886 = vrot.slane %v884, 4
      %v887 = vshll.u32 %v244, 16
      %v889 = vrot.slane %v887, 5
      %v890 = vor.u32 %v886, %v889
      %v891 = vrot.slane %v890, 4
      %v893 = vshll.u32 %v245, 16
      %v895 = vrot.slane %v893, 5
      %v896 = vsel %vm250, %v891, %v895
      %v897 = vshrl.u32 %v245, 16
      %v899 = vrot.slane %v897, 4
      %v900 = vor.u32 %v899, %v895
      %v901 = vrot.slane %v900, 4
      %v903 = vshll.u32 %v246, 16
      %v905 = vrot.slane %v903, 5
      %v906 = vsel %vm250, %v901, %v905
      %v907 = vld [vmem:[%s1 + $0xc] sm:$0xf]
      %v908 = vunpack.c.l.b16 %v896
      %v909 = vunpack.c.l.b16 %v906
      %v910 = vpack.c.b16 %v909, %v908
      %v912 = vsel %vm468, %v910, 0
      %v915 = vsel %vm493, %v907, 0
      %917 = vmatprep.subr.bf16.mxu0 0
      %918 = vmatpush1.bf16.msra.mxu0 %v915
      %919 = vmatprep.subr.bf16.mxu0 0
      %920 = vmatpush1.bf16.msra.mxu0 0
      %921 = vmatprep.subr.bf16.mxu0 0
      %922 = vmatpush1.bf16.msra.mxu0 0
      %923 = vmatprep.subr.bf16.mxu0 0
      %924 = vmatpush1.bf16.msra.mxu0 0
      %925 = vmatprep.subr.bf16.mxu0 0
      %926 = vmatpush1.bf16.msra.mxu0 0
      %927 = vmatprep.subr.bf16.mxu0 0
      %928 = vmatpush1.bf16.msra.mxu0 0
      %929 = vmatprep.subr.bf16.mxu0 0
      %930 = vmatpush1.bf16.msra.mxu0 0
      %931 = vmatprep.subr.bf16.mxu0 0
      %932 = vmatpush1.bf16.msra.mxu0 0
      %933 = vmatprep.subr.bf16.mxu0 0
      %934 = vmatpush1.bf16.msra.mxu0 0
      %935 = vmatprep.subr.bf16.mxu0 0
      %936 = vmatpush1.bf16.msra.mxu0 0
      %937 = vmatprep.subr.bf16.mxu0 0
      %938 = vmatpush1.bf16.msra.mxu0 0
      %939 = vmatprep.subr.bf16.mxu0 0
      %940 = vmatpush1.bf16.msra.mxu0 0
      %941 = vmatprep.subr.bf16.mxu0 0
      %942 = vmatpush1.bf16.msra.mxu0 0
      %943 = vmatprep.subr.bf16.mxu0 0
      %944 = vmatpush1.bf16.msra.mxu0 0
      %945 = vmatprep.subr.bf16.mxu0 0
      %946 = vmatpush1.bf16.msra.mxu0 0
      %947 = vmatprep.subr.bf16.mxu0 0
      %948 = vmatpush1.bf16.msra.mxu0 0
      %949 = vmatprep.mubr.bf16.mxu0 0
      %950 = vmatmul.mubr.bf16.gmra.mrb[0].mxu0 %v473
      %v951 = vpop.f32.mrb[0].mxu0
      %v952 = vadd.f32 0.0, %v951
      %v953 = vpop.f32.mrb[0].mxu0
      %v954 = vpop.f32.mrb[0].mxu0
      %v955 = vadd.f32 0.0, %v954
      %v956 = vpop.f32.mrb[0].mxu0
      %957 = vmatprep.mubr.bf16.mxu0 0
      %958 = vmatmul.mubr.bf16.gmra.mrb[0].mxu0 %v476
      %v959 = vpop.f32.mrb[0].mxu0
      %v960 = vadd.f32 0.0, %v959
      %v961 = vpop.f32.mrb[0].mxu0
      %v962 = vpop.f32.mrb[0].mxu0
      %v963 = vadd.f32 0.0, %v962
      %v964 = vpop.f32.mrb[0].mxu0
      %965 = vmatprep.mubr.bf16.mxu0 0
      %966 = vmatmul.mubr.bf16.gmra.mrb[0].mxu0 %v479
      %v967 = vpop.f32.mrb[0].mxu0
      %v968 = vadd.f32 0.0, %v967
      %v969 = vpop.f32.mrb[0].mxu0
      %v970 = vpop.f32.mrb[0].mxu0
      %v971 = vadd.f32 0.0, %v970
      %v972 = vpop.f32.mrb[0].mxu0
      %973 = vmatprep.mubr.bf16.mxu0 0
      %974 = vmatmul.mubr.bf16.gmra.mrb[0].mxu0 %v482
      %v975 = vpop.f32.mrb[0].mxu0
      %v976 = vadd.f32 0.0, %v975
      %v977 = vpop.f32.mrb[0].mxu0
      %v978 = vpop.f32.mrb[0].mxu0
      %v979 = vadd.f32 0.0, %v978
      %v980 = vpop.f32.mrb[0].mxu0
      %981 = vmatprep.mubr.bf16.mxu0 0
      %982 = vmatmul.mubr.bf16.gmra.mrb[0].mxu0 %v485
      %v983 = vpop.f32.mrb[0].mxu0
      %v984 = vadd.f32 0.0, %v983
      %v985 = vpop.f32.mrb[0].mxu0
      %v986 = vpop.f32.mrb[0].mxu0
      %v987 = vadd.f32 0.0, %v986
      %v988 = vpop.f32.mrb[0].mxu0
      %989 = vmatprep.mubr.bf16.mxu0 0
      %990 = vmatmul.mubr.bf16.gmra.mrb[0].mxu0 %v488
      %v991 = vpop.f32.mrb[0].mxu0
      %v992 = vadd.f32 0.0, %v991
      %v993 = vpop.f32.mrb[0].mxu0
      %v994 = vpop.f32.mrb[0].mxu0
      %v995 = vadd.f32 0.0, %v994
      %v996 = vpop.f32.mrb[0].mxu0
      %997 = vmatprep.mubr.bf16.mxu0 0
      %998 = vmatmul.mubr.bf16.gmra.mrb[0].mxu0 %v491
      %v999 = vpop.f32.mrb[0].mxu0
      %v1000 = vadd.f32 0.0, %v999
      %v1001 = vpop.f32.mrb[0].mxu0
      %v1002 = vpop.f32.mrb[0].mxu0
      %v1003 = vadd.f32 0.0, %v1002
      %v1004 = vpop.f32.mrb[0].mxu0
      %1005 = vmatprep.mubr.bf16.mxu0 0
      %1006 = vmatmul.mubr.bf16.gmra.mrb[0].mxu0 %v912
      %v1007 = vpop.f32.mrb[0].mxu0
      %v1008 = vadd.f32 0.0, %v1007
      %v1009 = vpop.f32.mrb[0].mxu0
      %v1010 = vpop.f32.mrb[0].mxu0
      %v1011 = vadd.f32 0.0, %v1010
      %v1012 = vpop.f32.mrb[0].mxu0
      %1013 = vdwg.mxu0
      %v1014 = vadd.f32 %v867, %v952
      %v1015 = vadd.f32 %v868, %v955
      %v1016 = vadd.f32 %v869, %v960
      %v1017 = vadd.f32 %v870, %v963
      %v1018 = vadd.f32 %v871, %v968
      %v1019 = vadd.f32 %v872, %v971
      %v1020 = vadd.f32 %v873, %v976
      %v1021 = vadd.f32 %v874, %v979
      %v1022 = vadd.f32 %v875, %v984
      %v1023 = vadd.f32 %v876, %v987
      %v1024 = vadd.f32 %v877, %v992
      %v1025 = vadd.f32 %v878, %v995
      %v1026 = vadd.f32 %v879, %v1000
      %v1027 = vadd.f32 %v880, %v1003
      %v1028 = vadd.f32 %v881, %v1008
      %v1029 = vadd.f32 %v882, %v1011
      %v1030 = vpack.c.bf16 %v1015, %v1014
      %v1031 = vpack.c.bf16 %v1017, %v1016
      %v1032 = vpack.c.bf16 %v1019, %v1018
      %v1033 = vpack.c.bf16 %v1021, %v1020
      %v1034 = vpack.c.bf16 %v1023, %v1022
      %v1035 = vpack.c.bf16 %v1025, %v1024
      %v1036 = vpack.c.bf16 %v1027, %v1026
      %v1037 = vpack.c.bf16 %v1029, %v1028
      %v1046 = vunpack.c.l.b16 %v1030
      %v1047 = vunpack.c.h.b16 %v1030
      %v1048 = vunpack.c.l.b16 %v1031
      %v1049 = vunpack.c.h.b16 %v1031
      %v1050 = vunpack.c.l.b16 %v1032
      %v1051 = vunpack.c.h.b16 %v1032
      %v1052 = vunpack.c.l.b16 %v1033
      %v1053 = vunpack.c.h.b16 %v1033
      %v1054 = vunpack.c.l.b16 %v1034
      %v1055 = vunpack.c.h.b16 %v1034
      %v1056 = vunpack.c.l.b16 %v1035
      %v1057 = vunpack.c.h.b16 %v1035
      %v1058 = vunpack.c.l.b16 %v1036
      %v1059 = vunpack.c.h.b16 %v1036
      %v1060 = vunpack.c.l.b16 %v1037
      %v1061 = vunpack.c.h.b16 %v1037
      %v1062 = vpack.c.b16 %v1046, %v1046
      %v1063 = vpack.c.b16 %v1047, %v1047
      %v1064 = vpack.c.b16 %v1048, %v1048
      %v1065 = vpack.c.b16 %v1049, %v1049
      %v1066 = vpack.c.b16 %v1050, %v1050
      %v1067 = vpack.c.b16 %v1051, %v1051
      %v1068 = vpack.c.b16 %v1052, %v1052
      %v1069 = vpack.c.b16 %v1053, %v1053
      %v1070 = vpack.c.b16 %v1054, %v1054
      %v1071 = vpack.c.b16 %v1055, %v1055
      %v1072 = vpack.c.b16 %v1056, %v1056
      %v1073 = vpack.c.b16 %v1057, %v1057
      %v1074 = vpack.c.b16 %v1058, %v1058
      %v1075 = vpack.c.b16 %v1059, %v1059
      %v1076 = vpack.c.b16 %v1060, %v1060
      %v1077 = vpack.c.b16 %v1061, %v1061
      %vm1094 = vcmask 125952
      %1095 = vst.msk [vmem:[%s205] sm:$0xf] %vm1094, %v1062
      %1096 = vst.msk [vmem:[%s205 + $0x4] sm:$0xf] %vm1094, %v1063
      %1097 = vst.msk [vmem:[%s205 + $0x8] sm:$0xf] %vm1094, %v1064
      %1098 = vst.msk [vmem:[%s205 + $0xc] sm:$0xf] %vm1094, %v1065
      %1099 = vst.msk [vmem:[%s205 + $0x10] sm:$0xf] %vm1094, %v1066
      %1100 = vst.msk [vmem:[%s205 + $0x14] sm:$0xf] %vm1094, %v1067
      %1101 = vst.msk [vmem:[%s205 + $0x18] sm:$0xf] %vm1094, %v1068
      %1102 = vst.msk [vmem:[%s205 + $0x1c] sm:$0xf] %vm1094, %v1069
      %1103 = vst.msk [vmem:[%s205 + $0x20] sm:$0xf] %vm1094, %v1070
      %1104 = vst.msk [vmem:[%s205 + $0x24] sm:$0xf] %vm1094, %v1071
      %1105 = vst.msk [vmem:[%s205 + $0x28] sm:$0xf] %vm1094, %v1072
      %1106 = vst.msk [vmem:[%s205 + $0x2c] sm:$0xf] %vm1094, %v1073
      %1107 = vst.msk [vmem:[%s205 + $0x30] sm:$0xf] %vm1094, %v1074
      %1108 = vst.msk [vmem:[%s205 + $0x34] sm:$0xf] %vm1094, %v1075
      %1109 = vst.msk [vmem:[%s205 + $0x38] sm:$0xf] %vm1094, %v1076
      %1110 = vst.msk [vmem:[%s205 + $0x3c] sm:$0xf] %vm1094, %v1077
      %vm1111 = vcmask 130048
      %v1112 = vsel %vm1111, %v1014, 0.0
      %v1113 = vsel %vm1111, %v1015, 0.0
      %v1114 = vadd.f32 %v1112, %v1113
      %v1115 = vsel %vm1111, %v1016, 0.0
      %v1116 = vadd.f32 %v1114, %v1115
      %v1117 = vsel %vm1111, %v1017, 0.0
      %v1118 = vadd.f32 %v1116, %v1117
      %v1119 = vsel %vm1111, %v1018, 0.0
      %v1120 = vadd.f32 %v1118, %v1119
      %v1121 = vsel %vm1111, %v1019, 0.0
      %v1122 = vadd.f32 %v1120, %v1121
      %v1123 = vsel %vm1111, %v1020, 0.0
      %v1124 = vadd.f32 %v1122, %v1123
      %v1125 = vsel %vm1111, %v1021, 0.0
      %v1126 = vadd.f32 %v1124, %v1125
      %v1127 = vsel %vm1111, %v1022, 0.0
      %v1128 = vadd.f32 %v1126, %v1127
      %v1129 = vsel %vm1111, %v1023, 0.0
      %v1130 = vadd.f32 %v1128, %v1129
      %v1131 = vsel %vm1111, %v1024, 0.0
      %v1132 = vadd.f32 %v1130, %v1131
      %v1133 = vsel %vm1111, %v1025, 0.0
      %v1134 = vadd.f32 %v1132, %v1133
      %v1135 = vsel %vm1111, %v1026, 0.0
      %v1136 = vadd.f32 %v1134, %v1135
      %v1137 = vsel %vm1111, %v1027, 0.0
      %v1138 = vadd.f32 %v1136, %v1137
      %v1139 = vsel %vm1111, %v1028, 0.0
      %v1140 = vadd.f32 %v1138, %v1139
      %v1141 = vsel %vm1111, %v1029, 0.0
      %v1142 = vadd.f32 %v1140, %v1141
      %v1143 = vrot.slane %v1142, 4
      %v1144 = vadd.f32 %v1142, %v1143
      %v1145 = vrot.slane %v1144, 2
      %v1146 = vadd.f32 %v1144, %v1145
      %v1147 = vrot.slane %v1146, 1
      %v1148 = vadd.f32 %v1146, %v1147
      %vm1149 = vcmask 122880
      %1150 = vst.msk [vmem:[%s212] sm:$0x1] %vm1149, %v1148
      %v1151 = vmul.f32 %v1014, %v1014
      %v1152 = vmul.f32 %v1015, %v1015
      %v1153 = vmul.f32 %v1016, %v1016
      %v1154 = vmul.f32 %v1017, %v1017
      %v1155 = vmul.f32 %v1018, %v1018
      %v1156 = vmul.f32 %v1019, %v1019
      %v1157 = vmul.f32 %v1020, %v1020
      %v1158 = vmul.f32 %v1021, %v1021
      %v1159 = vmul.f32 %v1022, %v1022
      %v1160 = vmul.f32 %v1023, %v1023
      %v1161 = vmul.f32 %v1024, %v1024
      %v1162 = vmul.f32 %v1025, %v1025
      %v1163 = vmul.f32 %v1026, %v1026
      %v1164 = vmul.f32 %v1027, %v1027
      %v1165 = vmul.f32 %v1028, %v1028
      %v1166 = vmul.f32 %v1029, %v1029
      %v1167 = vsel %vm1111, %v1151, 0.0
      %v1168 = vsel %vm1111, %v1152, 0.0
      %v1169 = vadd.f32 %v1167, %v1168
      %v1170 = vsel %vm1111, %v1153, 0.0
      %v1171 = vadd.f32 %v1169, %v1170
      %v1172 = vsel %vm1111, %v1154, 0.0
      %v1173 = vadd.f32 %v1171, %v1172
      %v1174 = vsel %vm1111, %v1155, 0.0
      %v1175 = vadd.f32 %v1173, %v1174
      %v1176 = vsel %vm1111, %v1156, 0.0
      %v1177 = vadd.f32 %v1175, %v1176
      %v1178 = vsel %vm1111, %v1157, 0.0
      %v1179 = vadd.f32 %v1177, %v1178
      %v1180 = vsel %vm1111, %v1158, 0.0
      %v1181 = vadd.f32 %v1179, %v1180
      %v1182 = vsel %vm1111, %v1159, 0.0
      %v1183 = vadd.f32 %v1181, %v1182
      %v1184 = vsel %vm1111, %v1160, 0.0
      %v1185 = vadd.f32 %v1183, %v1184
      %v1186 = vsel %vm1111, %v1161, 0.0
      %v1187 = vadd.f32 %v1185, %v1186
      %v1188 = vsel %vm1111, %v1162, 0.0
      %v1189 = vadd.f32 %v1187, %v1188
      %v1190 = vsel %vm1111, %v1163, 0.0
      %v1191 = vadd.f32 %v1189, %v1190
      %v1192 = vsel %vm1111, %v1164, 0.0
      %v1193 = vadd.f32 %v1191, %v1192
      %v1194 = vsel %vm1111, %v1165, 0.0
      %v1195 = vadd.f32 %v1193, %v1194
      %v1196 = vsel %vm1111, %v1166, 0.0
      %v1197 = vadd.f32 %v1195, %v1196
      %v1198 = vrot.slane %v1197, 4
      %v1199 = vadd.f32 %v1197, %v1198
      %v1200 = vrot.slane %v1199, 2
      %v1201 = vadd.f32 %v1199, %v1200
      %v1202 = vrot.slane %v1201, 1
      %v1203 = vadd.f32 %v1201, %v1202
      %1204 = vst.msk [vmem:[%s212 + $0x1] sm:$0x1] %vm1149, %v1203
      %s1205 = smul.u32 16, %s20
      %p1206 = scmp.lt.s32.totalorder %s19, 1
      %s1207 = scalar_select %p1206, %s19, 1
      %p1208 = scmp.lt.s32.totalorder %s1205, 31
      %s1209 = scalar_select %p1208, %s1205, 31
      %s1210 = smul.addr %s1207, 32
      %s1211 = sadd.s32 %s1209, %s1210
      %s1212 = smul.addr %s1211, 4
      %s1213 = scalar_lea.vmem %s2, %s1212
      %s1214 = smul.u32 %s19, 2
      %s1215 = sadd.s32 %s1214, %s20
      %p1216 = scmp.lt.s32.totalorder %s1215, 3
      %s1217 = scalar_select %p1216, %s1215, 3
      %s1218 = smul.addr %s1217, 2
      %s1219 = scalar_lea.vmem %s3, %s1218
      // Predicated region
      $region29: #{paper_decoder_block.2} parent=27 // pred_check
        %p1220 = pneg %p94
      $region30: #{paper_decoder_block.2} parent=27 // pred_check_branch
        %1222 = sbr.rel (%p1220) target = $region32
      $region31: #{paper_decoder_block.2} parent=27 // pred_region
        %s1223 = smul.u32 16, %s20
      $region32: #{paper_decoder_block.2} parent=27 // pred_fallthru
        _
      // Predicated region
      $region33: #{paper_decoder_block.2} parent=27 // pred_check
        %p1224 = pneg %p124
      $region34: #{paper_decoder_block.2} parent=27 // pred_check_branch
        %1226 = sbr.rel (%p1224) target = $region36
      $region35: #{paper_decoder_block.2} parent=27 // pred_region
        %s1227 = smul.u32 %s19, 2
        %s1228 = sadd.s32 %s1227, %s20
      $region36: #{paper_decoder_block.2} parent=27 // pred_fallthru
        _
    $region28: #{paper_decoder_block.2} parent=5 // pred_fallthru
      _
    %p1229 = scmp.le.s32.totalorder 2, %s10
    // Predicated region
    $region37: #{paper_decoder_block.2} parent=5 // pred_check
      %p1230 = pneg %p1229
    $region38: #{paper_decoder_block.2} parent=5 // pred_check_branch
      %1232 = sbr.rel (%p1230) target = $region40
    $region39: #{paper_decoder_block.2} parent=5 // pred_region
      %s1233 = ssub.s32 %s10, 2
      // Predicated region
      $region41: #{paper_decoder_block.2} parent=39 // pred_check
        %p1234 = pneg %p100
      $region42: #{paper_decoder_block.2} parent=39 // pred_check_branch
        %1236 = sbr.rel (%p1234) target = $region44
      $region43: #{paper_decoder_block.2} parent=39 // pred_region
        %s1237 = smul.u32 16, %s22
        %p1238 = scmp.lt.s32.totalorder %s21, 1
        %s1239 = scalar_select %p1238, %s21, 1
        %p1240 = scmp.lt.s32.totalorder %s1237, 31
        %s1241 = scalar_select %p1240, %s1237, 31
        %s1242 = smul.addr %s1239, 32
        %s1243 = sadd.s32 %s1241, %s1242
        %s1244 = smul.addr %s1243, 4
        %s1245 = scalar_lea.vmem %s2, %s1244
      $region44: #{paper_decoder_block.2} parent=39 // pred_fallthru
        _
      // Predicated region
      $region45: #{paper_decoder_block.2} parent=39 // pred_check
        %p1246 = pneg %p130
      $region46: #{paper_decoder_block.2} parent=39 // pred_check_branch
        %1248 = sbr.rel (%p1246) target = $region48
      $region47: #{paper_decoder_block.2} parent=39 // pred_region
        %s1249 = smul.u32 %s21, 2
        %s1250 = sadd.s32 %s1249, %s22
        %p1251 = scmp.lt.s32.totalorder %s1250, 3
        %s1252 = scalar_select %p1251, %s1250, 3
        %s1253 = smul.addr %s1252, 2
        %s1254 = scalar_lea.vmem %s3, %s1253
      $region48: #{paper_decoder_block.2} parent=39 // pred_fallthru
        _
    $region40: #{paper_decoder_block.2} parent=5 // pred_fallthru
      _
  $region6: #{paper_decoder_block.2} parent=0 // loop_footer
    %s14 = sadd.s32 1, %s10
  $region7: #{paper_decoder_block.2} parent=0 // loop_footer_branch
    %9 = sbr.rel target = $region3
  $region8: #{paper_decoder_block.2} parent=0 // loop_exit
    _

</llo_original>
